<compile_context>
chip_gen: v5e
topology: v5e:2x2
jax: 0.10.0
libtpu: 0.0.40
codegen_flags: <defaults>
</compile_context>

<pallas_src>
import jax
import jax.numpy as jnp
import numpy as np
from jax.experimental import pallas as pl
from jax.experimental.pallas import tpu as pltpu

N_FEATURES = 2
N_HIDDEN = 20
SEQ_LEN = 8
BATCH = 16
GATE_PAD = 128          # one full lane-group per gate
MAX_BATCH_TILE = 256    # MXU row count on v6e/v7x


def mv_lstm_kernel(gx_ref, whh_ref, wlin_ref, blin_ref, out_ref):
    """Serial LSTM recurrence + fused final Linear for one batch tile.

    gx_ref:   (T, BT, 4*GP)  precomputed x @ W_ih^T + (b_ih + b_hh), gate-padded
    whh_ref:  (GP, 4*GP)     recurrent weights; gate g occupies cols [g*GP, g*GP+H)
    wlin_ref: (T, GP)        final Linear weight, row t multiplies h_t (padded lanes 0)
    blin_ref: (1, 1)         final Linear bias
    out_ref:  (BT, 1)
    """
    T = gx_ref.shape[0]
    BT = gx_ref.shape[1]
    GP = whh_ref.shape[0]

    # Recurrent weight loaded once, reused across all T steps.
    # TODO(synk): on v6e/v7x this RHS could be held stationary in the MXU via
    # pltpu.matmul_push_rhs / matmul_acc_lhs; kept as jnp.dot for robustness.
    whh = whh_ref[...]

    h = jnp.zeros((BT, GP), jnp.float32)
    c = jnp.zeros((BT, GP), jnp.float32)
    acc = jnp.zeros((BT, GP), jnp.float32)

    # Static unroll over T=8 (LLO scheduler sees across steps).  gx stays in
    # VMEM and is loaded per step so it never lives in vregs across the unroll.
    for t in range(T):
        gates = gx_ref[t] + jnp.dot(h, whh, preferred_element_type=jnp.float32)
        # Whole-vreg gate views (128-lane aligned) -> no XLU rotates on the
        # serial dependency chain.  PyTorch gate order: i, f, g, o.
        i_g = jax.nn.sigmoid(gates[:, 0 * GP:1 * GP])
        f_g = jax.nn.sigmoid(gates[:, 1 * GP:2 * GP])
        g_g = jnp.tanh(gates[:, 2 * GP:3 * GP])
        o_g = jax.nn.sigmoid(gates[:, 3 * GP:4 * GP])
        c = f_g * c + i_g * g_g
        h = o_g * jnp.tanh(c)
        # Fused final Linear: VPU accumulate (off the critical chain).  Padded
        # lanes of h and wlin are exactly zero, so the lane reduction is safe.
        acc = acc + h * wlin_ref[t:t + 1, :]

    # (BT, 1) output: single masked store, negligible at this size.
    out_ref[...] = jnp.sum(acc, axis=-1, keepdims=True) + blin_ref[...]


def _pack_gate_major(w, hidden, gate_pad):
    """(4H, K) PyTorch gate stack -> (K, 4*gate_pad); gate g in cols [g*GP, g*GP+H)."""
    K = w.shape[1]
    w4 = w.reshape(4, hidden, K)
    w4p = jnp.zeros((4, gate_pad, K), w.dtype).at[:, :hidden, :].set(w4)
    return jnp.transpose(w4p, (2, 0, 1)).reshape(K, 4 * gate_pad)


def mv_lstm_forward(x, params):
    """x: (B, T, F) float32 -> (B, 1) float32 (MV_LSTM.forward with zero init state)."""
    w_ih, w_hh, b_ih, b_hh, w_lin, b_lin = params
    B, T, F = x.shape
    H = N_HIDDEN
    GP = GATE_PAD

    # ---- layout / packing (once, by XLA, off the kernel's critical path) ----
    wih = _pack_gate_major(w_ih, H, GP)                                  # (F, 4*GP)
    whh = _pack_gate_major(w_hh, H, GP)                                  # (H, 4*GP)
    whh = jnp.zeros((GP, 4 * GP), jnp.float32).at[:H, :].set(whh)        # pad K -> GP
    bias = jnp.zeros((4, GP), jnp.float32).at[:, :H].set(
        (b_ih + b_hh).reshape(4, H)).reshape(1, 4 * GP)

    # Hoisted input projection: one (T*B, F) @ (F, 4*GP) matmul + bias outside
    # the serial recurrence (and fusable with whatever produced x).
    x_tmaj = jnp.transpose(x, (1, 0, 2)).reshape(T * B, F)
    gx = (x_tmaj @ wih + bias).reshape(T, B, 4 * GP)

    wlin = jnp.zeros((T, GP), jnp.float32).at[:, :H].set(w_lin.reshape(T, H))
    blin = b_lin.reshape(1, 1)

    # Batch-tile grid: single step at B=16; scales & splits across v7x cores
    # if B grows (per-step latency is ~independent of BT up to the MXU rows).
    BT = B if B <= MAX_BATCH_TILE else MAX_BATCH_TILE
    assert B % BT == 0 and BT % 8 == 0, "batch must be a multiple of 8"
    grid = (B // BT,)

    return pl.pallas_call(
        mv_lstm_kernel,
        out_shape=jax.ShapeDtypeStruct((B, 1), jnp.float32),
        grid=grid,
        in_specs=[
            pl.BlockSpec((T, BT, 4 * GP), lambda b: (0, b, 0)),   # gx: per batch tile
            pl.BlockSpec((GP, 4 * GP), lambda b: (0, 0)),         # whh: resident
            pl.BlockSpec((T, GP), lambda b: (0, 0)),              # wlin
            pl.BlockSpec((1, 1), lambda b: (0, 0)),               # blin
        ],
        out_specs=pl.BlockSpec((BT, 1), lambda b: (b, 0)),
        compiler_params=pltpu.CompilerParams(
            dimension_semantics=("parallel",)),
    )(gx, whh, wlin, blin)


def mv_lstm_reference(x, params):
    """Pure-JAX reference matching torch.nn.LSTM + Linear semantics."""
    w_ih, w_hh, b_ih, b_hh, w_lin, b_lin = params
    B, T, F = x.shape
    H = N_HIDDEN
    h = jnp.zeros((B, H), jnp.float32)
    c = jnp.zeros((B, H), jnp.float32)
    outs = []
    for t in range(T):
        gates = x[:, t, :] @ w_ih.T + h @ w_hh.T + b_ih + b_hh
        i, f, g, o = jnp.split(gates, 4, axis=1)
        c = jax.nn.sigmoid(f) * c + jax.nn.sigmoid(i) * jnp.tanh(g)
        h = jax.nn.sigmoid(o) * jnp.tanh(c)
        outs.append(h)
    lstm_out = jnp.stack(outs, axis=1).reshape(B, T * H)
    return lstm_out @ w_lin.T + b_lin


def init_params(key):
    """Deterministic init, PyTorch-style shapes, uniform(-1/sqrt(H), 1/sqrt(H))."""
    H, F, T = N_HIDDEN, N_FEATURES, SEQ_LEN
    k = 1.0 / np.sqrt(H)
    keys = jax.random.split(key, 6)
    u = lambda kk, shape: jax.random.uniform(kk, shape, jnp.float32, -k, k)
    w_ih = u(keys[0], (4 * H, F))
    w_hh = u(keys[1], (4 * H, H))
    b_ih = u(keys[2], (4 * H,))
    b_hh = u(keys[3], (4 * H,))
    w_lin = u(keys[4], (1, T * H))
    b_lin = u(keys[5], (1,))
    return w_ih, w_hh, b_ih, b_hh, w_lin, b_lin


if __name__ == "__main__":
    key = jax.random.PRNGKey(0)
    pkey, xkey = jax.random.split(key)
    params = init_params(pkey)
    x = jax.random.normal(xkey, (BATCH, SEQ_LEN, N_FEATURES), jnp.float32)

    out = jax.block_until_ready(mv_lstm_forward(x, params))
    ref = jax.block_until_ready(mv_lstm_reference(x, params))

    assert out.shape == (BATCH, 1)
    np.testing.assert_allclose(np.asarray(out), np.asarray(ref), rtol=1e-4, atol=1e-5)
    print("KERNEL_OK")
</pallas_src>

<mosaic_0001>
module attributes {stable_mosaic.version = 11 : i64} {
  func.func @mv_lstm_kernel(%arg0: i32, %arg1: memref<8x16x512xf32, #tpu.memory_space<vmem>>, %arg2: memref<128x512xf32, #tpu.memory_space<vmem>>, %arg3: memref<8x128xf32, #tpu.memory_space<vmem>>, %arg4: memref<1x1xf32, #tpu.memory_space<vmem>>, %arg5: memref<16x1xf32, #tpu.memory_space<vmem>>) attributes {dimension_semantics = [#tpu.dimension_semantics<parallel>], iteration_bounds = array<i64: 1>, scalar_prefetch = 0 : i64, scratch_operands = 0 : i64, tpu.core_type = #tpu.core_type<tc>, window_params = [{transform_indices = @transform_0, window_bounds = array<i64: 8, 16, 512>}, {pipeline_mode = #tpu.pipeline_mode<synchronous>, transform_indices = @transform_1, window_bounds = array<i64: 128, 512>}, {pipeline_mode = #tpu.pipeline_mode<synchronous>, transform_indices = @transform_2, window_bounds = array<i64: 8, 128>}, {pipeline_mode = #tpu.pipeline_mode<synchronous>, transform_indices = @transform_3, window_bounds = array<i64: 1, 1>}, {transform_indices = @transform_4, window_bounds = array<i64: 16, 1>}]} {
    %c0 = arith.constant 0 : index
    %c0_0 = arith.constant 0 : index
    %0 = vector.load %arg2[%c0, %c0_0] : memref<128x512xf32, #tpu.memory_space<vmem>>, vector<128x512xf32>
    %cst = arith.constant 0.000000e+00 : f32
    %1 = vector.broadcast %cst : f32 to vector<16x128xf32>
    %cst_1 = arith.constant 0.000000e+00 : f32
    %2 = vector.broadcast %cst_1 : f32 to vector<16x128xf32>
    %cst_2 = arith.constant 0.000000e+00 : f32
    %3 = vector.broadcast %cst_2 : f32 to vector<16x128xf32>
    %c0_3 = arith.constant 0 : index
    %c0_4 = arith.constant 0 : index
    %c0_5 = arith.constant 0 : index
    %4 = vector.load %arg1[%c0_3, %c0_4, %c0_5] : memref<8x16x512xf32, #tpu.memory_space<vmem>>, vector<1x16x512xf32>
    %5 = vector.shape_cast %4 : vector<1x16x512xf32> to vector<16x512xf32>
    %cst_6 = arith.constant dense<0.000000e+00> : vector<16x512xf32>
    %6 = tpu.matmul %1, %0, %cst_6 {dimension_numbers = #tpu.dot_dimension_numbers<[1], [0], [0], [1], [0, 0, 1, 1], [], []>} : vector<16x128xf32>, vector<128x512xf32>, vector<16x512xf32> -> vector<16x512xf32>
    %7 = arith.addf %5, %6 : vector<16x512xf32>
    %8 = vector.extract_strided_slice %7 {offsets = [0, 0], sizes = [16, 128], strides = [1, 1]} : vector<16x512xf32> to vector<16x128xf32>
    %9 = arith.negf %8 : vector<16x128xf32>
    %10 = math.exp %9 : vector<16x128xf32>
    %cst_7 = arith.constant 1.000000e+00 : f32
    %11 = vector.broadcast %cst_7 : f32 to vector<16x128xf32>
    %12 = arith.addf %11, %10 : vector<16x128xf32>
    %13 = arith.divf %11, %12 : vector<16x128xf32>
    %14 = vector.extract_strided_slice %7 {offsets = [0, 128], sizes = [16, 128], strides = [1, 1]} : vector<16x512xf32> to vector<16x128xf32>
    %15 = arith.negf %14 : vector<16x128xf32>
    %16 = math.exp %15 : vector<16x128xf32>
    %cst_8 = arith.constant 1.000000e+00 : f32
    %17 = vector.broadcast %cst_8 : f32 to vector<16x128xf32>
    %18 = arith.addf %17, %16 : vector<16x128xf32>
    %19 = arith.divf %17, %18 : vector<16x128xf32>
    %20 = vector.extract_strided_slice %7 {offsets = [0, 256], sizes = [16, 128], strides = [1, 1]} : vector<16x512xf32> to vector<16x128xf32>
    %21 = math.tanh %20 : vector<16x128xf32>
    %22 = vector.extract_strided_slice %7 {offsets = [0, 384], sizes = [16, 128], strides = [1, 1]} : vector<16x512xf32> to vector<16x128xf32>
    %23 = arith.negf %22 : vector<16x128xf32>
    %24 = math.exp %23 : vector<16x128xf32>
    %cst_9 = arith.constant 1.000000e+00 : f32
    %25 = vector.broadcast %cst_9 : f32 to vector<16x128xf32>
    %26 = arith.addf %25, %24 : vector<16x128xf32>
    %27 = arith.divf %25, %26 : vector<16x128xf32>
    %28 = arith.mulf %19, %2 : vector<16x128xf32>
    %29 = arith.mulf %13, %21 : vector<16x128xf32>
    %30 = arith.addf %28, %29 : vector<16x128xf32>
    %31 = math.tanh %30 : vector<16x128xf32>
    %32 = arith.mulf %27, %31 : vector<16x128xf32>
    %c0_10 = arith.constant 0 : index
    %c0_11 = arith.constant 0 : index
    %33 = vector.load %arg3[%c0_10, %c0_11] : memref<8x128xf32, #tpu.memory_space<vmem>>, vector<1x128xf32>
    %34 = vector.broadcast %33 : vector<1x128xf32> to vector<16x128xf32>
    %35 = arith.mulf %32, %34 : vector<16x128xf32>
    %36 = arith.addf %3, %35 : vector<16x128xf32>
    %c1 = arith.constant 1 : index
    %c0_12 = arith.constant 0 : index
    %c0_13 = arith.constant 0 : index
    %37 = vector.load %arg1[%c1, %c0_12, %c0_13] : memref<8x16x512xf32, #tpu.memory_space<vmem>>, vector<1x16x512xf32>
    %38 = vector.shape_cast %37 : vector<1x16x512xf32> to vector<16x512xf32>
    %cst_14 = arith.constant dense<0.000000e+00> : vector<16x512xf32>
    %39 = tpu.matmul %32, %0, %cst_14 {dimension_numbers = #tpu.dot_dimension_numbers<[1], [0], [0], [1], [0, 0, 1, 1], [], []>} : vector<16x128xf32>, vector<128x512xf32>, vector<16x512xf32> -> vector<16x512xf32>
    %40 = arith.addf %38, %39 : vector<16x512xf32>
    %41 = vector.extract_strided_slice %40 {offsets = [0, 0], sizes = [16, 128], strides = [1, 1]} : vector<16x512xf32> to vector<16x128xf32>
    %42 = arith.negf %41 : vector<16x128xf32>
    %43 = math.exp %42 : vector<16x128xf32>
    %cst_15 = arith.constant 1.000000e+00 : f32
    %44 = vector.broadcast %cst_15 : f32 to vector<16x128xf32>
    %45 = arith.addf %44, %43 : vector<16x128xf32>
    %46 = arith.divf %44, %45 : vector<16x128xf32>
    %47 = vector.extract_strided_slice %40 {offsets = [0, 128], sizes = [16, 128], strides = [1, 1]} : vector<16x512xf32> to vector<16x128xf32>
    %48 = arith.negf %47 : vector<16x128xf32>
    %49 = math.exp %48 : vector<16x128xf32>
    %cst_16 = arith.constant 1.000000e+00 : f32
    %50 = vector.broadcast %cst_16 : f32 to vector<16x128xf32>
    %51 = arith.addf %50, %49 : vector<16x128xf32>
    %52 = arith.divf %50, %51 : vector<16x128xf32>
    %53 = vector.extract_strided_slice %40 {offsets = [0, 256], sizes = [16, 128], strides = [1, 1]} : vector<16x512xf32> to vector<16x128xf32>
    %54 = math.tanh %53 : vector<16x128xf32>
    %55 = vector.extract_strided_slice %40 {offsets = [0, 384], sizes = [16, 128], strides = [1, 1]} : vector<16x512xf32> to vector<16x128xf32>
    %56 = arith.negf %55 : vector<16x128xf32>
    %57 = math.exp %56 : vector<16x128xf32>
    %cst_17 = arith.constant 1.000000e+00 : f32
    %58 = vector.broadcast %cst_17 : f32 to vector<16x128xf32>
    %59 = arith.addf %58, %57 : vector<16x128xf32>
    %60 = arith.divf %58, %59 : vector<16x128xf32>
    %61 = arith.mulf %52, %30 : vector<16x128xf32>
    %62 = arith.mulf %46, %54 : vector<16x128xf32>
    %63 = arith.addf %61, %62 : vector<16x128xf32>
    %64 = math.tanh %63 : vector<16x128xf32>
    %65 = arith.mulf %60, %64 : vector<16x128xf32>
    %c1_18 = arith.constant 1 : index
    %c0_19 = arith.constant 0 : index
    %66 = vector.load %arg3[%c1_18, %c0_19] : memref<8x128xf32, #tpu.memory_space<vmem>>, vector<1x128xf32>
    %67 = vector.broadcast %66 : vector<1x128xf32> to vector<16x128xf32>
    %68 = arith.mulf %65, %67 : vector<16x128xf32>
    %69 = arith.addf %36, %68 : vector<16x128xf32>
    %c2 = arith.constant 2 : index
    %c0_20 = arith.constant 0 : index
    %c0_21 = arith.constant 0 : index
    %70 = vector.load %arg1[%c2, %c0_20, %c0_21] : memref<8x16x512xf32, #tpu.memory_space<vmem>>, vector<1x16x512xf32>
    %71 = vector.shape_cast %70 : vector<1x16x512xf32> to vector<16x512xf32>
    %cst_22 = arith.constant dense<0.000000e+00> : vector<16x512xf32>
    %72 = tpu.matmul %65, %0, %cst_22 {dimension_numbers = #tpu.dot_dimension_numbers<[1], [0], [0], [1], [0, 0, 1, 1], [], []>} : vector<16x128xf32>, vector<128x512xf32>, vector<16x512xf32> -> vector<16x512xf32>
    %73 = arith.addf %71, %72 : vector<16x512xf32>
    %74 = vector.extract_strided_slice %73 {offsets = [0, 0], sizes = [16, 128], strides = [1, 1]} : vector<16x512xf32> to vector<16x128xf32>
    %75 = arith.negf %74 : vector<16x128xf32>
    %76 = math.exp %75 : vector<16x128xf32>
    %cst_23 = arith.constant 1.000000e+00 : f32
    %77 = vector.broadcast %cst_23 : f32 to vector<16x128xf32>
    %78 = arith.addf %77, %76 : vector<16x128xf32>
    %79 = arith.divf %77, %78 : vector<16x128xf32>
    %80 = vector.extract_strided_slice %73 {offsets = [0, 128], sizes = [16, 128], strides = [1, 1]} : vector<16x512xf32> to vector<16x128xf32>
    %81 = arith.negf %80 : vector<16x128xf32>
    %82 = math.exp %81 : vector<16x128xf32>
    %cst_24 = arith.constant 1.000000e+00 : f32
    %83 = vector.broadcast %cst_24 : f32 to vector<16x128xf32>
    %84 = arith.addf %83, %82 : vector<16x128xf32>
    %85 = arith.divf %83, %84 : vector<16x128xf32>
    %86 = vector.extract_strided_slice %73 {offsets = [0, 256], sizes = [16, 128], strides = [1, 1]} : vector<16x512xf32> to vector<16x128xf32>
    %87 = math.tanh %86 : vector<16x128xf32>
    %88 = vector.extract_strided_slice %73 {offsets = [0, 384], sizes = [16, 128], strides = [1, 1]} : vector<16x512xf32> to vector<16x128xf32>
    %89 = arith.negf %88 : vector<16x128xf32>
    %90 = math.exp %89 : vector<16x128xf32>
    %cst_25 = arith.constant 1.000000e+00 : f32
    %91 = vector.broadcast %cst_25 : f32 to vector<16x128xf32>
    %92 = arith.addf %91, %90 : vector<16x128xf32>
    %93 = arith.divf %91, %92 : vector<16x128xf32>
    %94 = arith.mulf %85, %63 : vector<16x128xf32>
    %95 = arith.mulf %79, %87 : vector<16x128xf32>
    %96 = arith.addf %94, %95 : vector<16x128xf32>
    %97 = math.tanh %96 : vector<16x128xf32>
    %98 = arith.mulf %93, %97 : vector<16x128xf32>
    %c2_26 = arith.constant 2 : index
    %c0_27 = arith.constant 0 : index
    %99 = vector.load %arg3[%c2_26, %c0_27] : memref<8x128xf32, #tpu.memory_space<vmem>>, vector<1x128xf32>
    %100 = vector.broadcast %99 : vector<1x128xf32> to vector<16x128xf32>
    %101 = arith.mulf %98, %100 : vector<16x128xf32>
    %102 = arith.addf %69, %101 : vector<16x128xf32>
    %c3 = arith.constant 3 : index
    %c0_28 = arith.constant 0 : index
    %c0_29 = arith.constant 0 : index
    %103 = vector.load %arg1[%c3, %c0_28, %c0_29] : memref<8x16x512xf32, #tpu.memory_space<vmem>>, vector<1x16x512xf32>
    %104 = vector.shape_cast %103 : vector<1x16x512xf32> to vector<16x512xf32>
    %cst_30 = arith.constant dense<0.000000e+00> : vector<16x512xf32>
    %105 = tpu.matmul %98, %0, %cst_30 {dimension_numbers = #tpu.dot_dimension_numbers<[1], [0], [0], [1], [0, 0, 1, 1], [], []>} : vector<16x128xf32>, vector<128x512xf32>, vector<16x512xf32> -> vector<16x512xf32>
    %106 = arith.addf %104, %105 : vector<16x512xf32>
    %107 = vector.extract_strided_slice %106 {offsets = [0, 0], sizes = [16, 128], strides = [1, 1]} : vector<16x512xf32> to vector<16x128xf32>
    %108 = arith.negf %107 : vector<16x128xf32>
    %109 = math.exp %108 : vector<16x128xf32>
    %cst_31 = arith.constant 1.000000e+00 : f32
    %110 = vector.broadcast %cst_31 : f32 to vector<16x128xf32>
    %111 = arith.addf %110, %109 : vector<16x128xf32>
    %112 = arith.divf %110, %111 : vector<16x128xf32>
    %113 = vector.extract_strided_slice %106 {offsets = [0, 128], sizes = [16, 128], strides = [1, 1]} : vector<16x512xf32> to vector<16x128xf32>
    %114 = arith.negf %113 : vector<16x128xf32>
    %115 = math.exp %114 : vector<16x128xf32>
    %cst_32 = arith.constant 1.000000e+00 : f32
    %116 = vector.broadcast %cst_32 : f32 to vector<16x128xf32>
    %117 = arith.addf %116, %115 : vector<16x128xf32>
    %118 = arith.divf %116, %117 : vector<16x128xf32>
    %119 = vector.extract_strided_slice %106 {offsets = [0, 256], sizes = [16, 128], strides = [1, 1]} : vector<16x512xf32> to vector<16x128xf32>
    %120 = math.tanh %119 : vector<16x128xf32>
    %121 = vector.extract_strided_slice %106 {offsets = [0, 384], sizes = [16, 128], strides = [1, 1]} : vector<16x512xf32> to vector<16x128xf32>
    %122 = arith.negf %121 : vector<16x128xf32>
    %123 = math.exp %122 : vector<16x128xf32>
    %cst_33 = arith.constant 1.000000e+00 : f32
    %124 = vector.broadcast %cst_33 : f32 to vector<16x128xf32>
    %125 = arith.addf %124, %123 : vector<16x128xf32>
    %126 = arith.divf %124, %125 : vector<16x128xf32>
    %127 = arith.mulf %118, %96 : vector<16x128xf32>
    %128 = arith.mulf %112, %120 : vector<16x128xf32>
    %129 = arith.addf %127, %128 : vector<16x128xf32>
    %130 = math.tanh %129 : vector<16x128xf32>
    %131 = arith.mulf %126, %130 : vector<16x128xf32>
    %c3_34 = arith.constant 3 : index
    %c0_35 = arith.constant 0 : index
    %132 = vector.load %arg3[%c3_34, %c0_35] : memref<8x128xf32, #tpu.memory_space<vmem>>, vector<1x128xf32>
    %133 = vector.broadcast %132 : vector<1x128xf32> to vector<16x128xf32>
    %134 = arith.mulf %131, %133 : vector<16x128xf32>
    %135 = arith.addf %102, %134 : vector<16x128xf32>
    %c4 = arith.constant 4 : index
    %c0_36 = arith.constant 0 : index
    %c0_37 = arith.constant 0 : index
    %136 = vector.load %arg1[%c4, %c0_36, %c0_37] : memref<8x16x512xf32, #tpu.memory_space<vmem>>, vector<1x16x512xf32>
    %137 = vector.shape_cast %136 : vector<1x16x512xf32> to vector<16x512xf32>
    %cst_38 = arith.constant dense<0.000000e+00> : vector<16x512xf32>
    %138 = tpu.matmul %131, %0, %cst_38 {dimension_numbers = #tpu.dot_dimension_numbers<[1], [0], [0], [1], [0, 0, 1, 1], [], []>} : vector<16x128xf32>, vector<128x512xf32>, vector<16x512xf32> -> vector<16x512xf32>
    %139 = arith.addf %137, %138 : vector<16x512xf32>
    %140 = vector.extract_strided_slice %139 {offsets = [0, 0], sizes = [16, 128], strides = [1, 1]} : vector<16x512xf32> to vector<16x128xf32>
    %141 = arith.negf %140 : vector<16x128xf32>
    %142 = math.exp %141 : vector<16x128xf32>
    %cst_39 = arith.constant 1.000000e+00 : f32
    %143 = vector.broadcast %cst_39 : f32 to vector<16x128xf32>
    %144 = arith.addf %143, %142 : vector<16x128xf32>
    %145 = arith.divf %143, %144 : vector<16x128xf32>
    %146 = vector.extract_strided_slice %139 {offsets = [0, 128], sizes = [16, 128], strides = [1, 1]} : vector<16x512xf32> to vector<16x128xf32>
    %147 = arith.negf %146 : vector<16x128xf32>
    %148 = math.exp %147 : vector<16x128xf32>
    %cst_40 = arith.constant 1.000000e+00 : f32
    %149 = vector.broadcast %cst_40 : f32 to vector<16x128xf32>
    %150 = arith.addf %149, %148 : vector<16x128xf32>
    %151 = arith.divf %149, %150 : vector<16x128xf32>
    %152 = vector.extract_strided_slice %139 {offsets = [0, 256], sizes = [16, 128], strides = [1, 1]} : vector<16x512xf32> to vector<16x128xf32>
    %153 = math.tanh %152 : vector<16x128xf32>
    %154 = vector.extract_strided_slice %139 {offsets = [0, 384], sizes = [16, 128], strides = [1, 1]} : vector<16x512xf32> to vector<16x128xf32>
    %155 = arith.negf %154 : vector<16x128xf32>
    %156 = math.exp %155 : vector<16x128xf32>
    %cst_41 = arith.constant 1.000000e+00 : f32
    %157 = vector.broadcast %cst_41 : f32 to vector<16x128xf32>
    %158 = arith.addf %157, %156 : vector<16x128xf32>
    %159 = arith.divf %157, %158 : vector<16x128xf32>
    %160 = arith.mulf %151, %129 : vector<16x128xf32>
    %161 = arith.mulf %145, %153 : vector<16x128xf32>
    %162 = arith.addf %160, %161 : vector<16x128xf32>
    %163 = math.tanh %162 : vector<16x128xf32>
    %164 = arith.mulf %159, %163 : vector<16x128xf32>
    %c4_42 = arith.constant 4 : index
    %c0_43 = arith.constant 0 : index
    %165 = vector.load %arg3[%c4_42, %c0_43] : memref<8x128xf32, #tpu.memory_space<vmem>>, vector<1x128xf32>
    %166 = vector.broadcast %165 : vector<1x128xf32> to vector<16x128xf32>
    %167 = arith.mulf %164, %166 : vector<16x128xf32>
    %168 = arith.addf %135, %167 : vector<16x128xf32>
    %c5 = arith.constant 5 : index
    %c0_44 = arith.constant 0 : index
    %c0_45 = arith.constant 0 : index
    %169 = vector.load %arg1[%c5, %c0_44, %c0_45] : memref<8x16x512xf32, #tpu.memory_space<vmem>>, vector<1x16x512xf32>
    %170 = vector.shape_cast %169 : vector<1x16x512xf32> to vector<16x512xf32>
    %cst_46 = arith.constant dense<0.000000e+00> : vector<16x512xf32>
    %171 = tpu.matmul %164, %0, %cst_46 {dimension_numbers = #tpu.dot_dimension_numbers<[1], [0], [0], [1], [0, 0, 1, 1], [], []>} : vector<16x128xf32>, vector<128x512xf32>, vector<16x512xf32> -> vector<16x512xf32>
    %172 = arith.addf %170, %171 : vector<16x512xf32>
    %173 = vector.extract_strided_slice %172 {offsets = [0, 0], sizes = [16, 128], strides = [1, 1]} : vector<16x512xf32> to vector<16x128xf32>
    %174 = arith.negf %173 : vector<16x128xf32>
    %175 = math.exp %174 : vector<16x128xf32>
    %cst_47 = arith.constant 1.000000e+00 : f32
    %176 = vector.broadcast %cst_47 : f32 to vector<16x128xf32>
    %177 = arith.addf %176, %175 : vector<16x128xf32>
    %178 = arith.divf %176, %177 : vector<16x128xf32>
    %179 = vector.extract_strided_slice %172 {offsets = [0, 128], sizes = [16, 128], strides = [1, 1]} : vector<16x512xf32> to vector<16x128xf32>
    %180 = arith.negf %179 : vector<16x128xf32>
    %181 = math.exp %180 : vector<16x128xf32>
    %cst_48 = arith.constant 1.000000e+00 : f32
    %182 = vector.broadcast %cst_48 : f32 to vector<16x128xf32>
    %183 = arith.addf %182, %181 : vector<16x128xf32>
    %184 = arith.divf %182, %183 : vector<16x128xf32>
    %185 = vector.extract_strided_slice %172 {offsets = [0, 256], sizes = [16, 128], strides = [1, 1]} : vector<16x512xf32> to vector<16x128xf32>
    %186 = math.tanh %185 : vector<16x128xf32>
    %187 = vector.extract_strided_slice %172 {offsets = [0, 384], sizes = [16, 128], strides = [1, 1]} : vector<16x512xf32> to vector<16x128xf32>
    %188 = arith.negf %187 : vector<16x128xf32>
    %189 = math.exp %188 : vector<16x128xf32>
    %cst_49 = arith.constant 1.000000e+00 : f32
    %190 = vector.broadcast %cst_49 : f32 to vector<16x128xf32>
    %191 = arith.addf %190, %189 : vector<16x128xf32>
    %192 = arith.divf %190, %191 : vector<16x128xf32>
    %193 = arith.mulf %184, %162 : vector<16x128xf32>
    %194 = arith.mulf %178, %186 : vector<16x128xf32>
    %195 = arith.addf %193, %194 : vector<16x128xf32>
    %196 = math.tanh %195 : vector<16x128xf32>
    %197 = arith.mulf %192, %196 : vector<16x128xf32>
    %c5_50 = arith.constant 5 : index
    %c0_51 = arith.constant 0 : index
    %198 = vector.load %arg3[%c5_50, %c0_51] : memref<8x128xf32, #tpu.memory_space<vmem>>, vector<1x128xf32>
    %199 = vector.broadcast %198 : vector<1x128xf32> to vector<16x128xf32>
    %200 = arith.mulf %197, %199 : vector<16x128xf32>
    %201 = arith.addf %168, %200 : vector<16x128xf32>
    %c6 = arith.constant 6 : index
    %c0_52 = arith.constant 0 : index
    %c0_53 = arith.constant 0 : index
    %202 = vector.load %arg1[%c6, %c0_52, %c0_53] : memref<8x16x512xf32, #tpu.memory_space<vmem>>, vector<1x16x512xf32>
    %203 = vector.shape_cast %202 : vector<1x16x512xf32> to vector<16x512xf32>
    %cst_54 = arith.constant dense<0.000000e+00> : vector<16x512xf32>
    %204 = tpu.matmul %197, %0, %cst_54 {dimension_numbers = #tpu.dot_dimension_numbers<[1], [0], [0], [1], [0, 0, 1, 1], [], []>} : vector<16x128xf32>, vector<128x512xf32>, vector<16x512xf32> -> vector<16x512xf32>
    %205 = arith.addf %203, %204 : vector<16x512xf32>
    %206 = vector.extract_strided_slice %205 {offsets = [0, 0], sizes = [16, 128], strides = [1, 1]} : vector<16x512xf32> to vector<16x128xf32>
    %207 = arith.negf %206 : vector<16x128xf32>
    %208 = math.exp %207 : vector<16x128xf32>
    %cst_55 = arith.constant 1.000000e+00 : f32
    %209 = vector.broadcast %cst_55 : f32 to vector<16x128xf32>
    %210 = arith.addf %209, %208 : vector<16x128xf32>
    %211 = arith.divf %209, %210 : vector<16x128xf32>
    %212 = vector.extract_strided_slice %205 {offsets = [0, 128], sizes = [16, 128], strides = [1, 1]} : vector<16x512xf32> to vector<16x128xf32>
    %213 = arith.negf %212 : vector<16x128xf32>
    %214 = math.exp %213 : vector<16x128xf32>
    %cst_56 = arith.constant 1.000000e+00 : f32
    %215 = vector.broadcast %cst_56 : f32 to vector<16x128xf32>
    %216 = arith.addf %215, %214 : vector<16x128xf32>
    %217 = arith.divf %215, %216 : vector<16x128xf32>
    %218 = vector.extract_strided_slice %205 {offsets = [0, 256], sizes = [16, 128], strides = [1, 1]} : vector<16x512xf32> to vector<16x128xf32>
    %219 = math.tanh %218 : vector<16x128xf32>
    %220 = vector.extract_strided_slice %205 {offsets = [0, 384], sizes = [16, 128], strides = [1, 1]} : vector<16x512xf32> to vector<16x128xf32>
    %221 = arith.negf %220 : vector<16x128xf32>
    %222 = math.exp %221 : vector<16x128xf32>
    %cst_57 = arith.constant 1.000000e+00 : f32
    %223 = vector.broadcast %cst_57 : f32 to vector<16x128xf32>
    %224 = arith.addf %223, %222 : vector<16x128xf32>
    %225 = arith.divf %223, %224 : vector<16x128xf32>
    %226 = arith.mulf %217, %195 : vector<16x128xf32>
    %227 = arith.mulf %211, %219 : vector<16x128xf32>
    %228 = arith.addf %226, %227 : vector<16x128xf32>
    %229 = math.tanh %228 : vector<16x128xf32>
    %230 = arith.mulf %225, %229 : vector<16x128xf32>
    %c6_58 = arith.constant 6 : index
    %c0_59 = arith.constant 0 : index
    %231 = vector.load %arg3[%c6_58, %c0_59] : memref<8x128xf32, #tpu.memory_space<vmem>>, vector<1x128xf32>
    %232 = vector.broadcast %231 : vector<1x128xf32> to vector<16x128xf32>
    %233 = arith.mulf %230, %232 : vector<16x128xf32>
    %234 = arith.addf %201, %233 : vector<16x128xf32>
    %c7 = arith.constant 7 : index
    %c0_60 = arith.constant 0 : index
    %c0_61 = arith.constant 0 : index
    %235 = vector.load %arg1[%c7, %c0_60, %c0_61] : memref<8x16x512xf32, #tpu.memory_space<vmem>>, vector<1x16x512xf32>
    %236 = vector.shape_cast %235 : vector<1x16x512xf32> to vector<16x512xf32>
    %cst_62 = arith.constant dense<0.000000e+00> : vector<16x512xf32>
    %237 = tpu.matmul %230, %0, %cst_62 {dimension_numbers = #tpu.dot_dimension_numbers<[1], [0], [0], [1], [0, 0, 1, 1], [], []>} : vector<16x128xf32>, vector<128x512xf32>, vector<16x512xf32> -> vector<16x512xf32>
    %238 = arith.addf %236, %237 : vector<16x512xf32>
    %239 = vector.extract_strided_slice %238 {offsets = [0, 0], sizes = [16, 128], strides = [1, 1]} : vector<16x512xf32> to vector<16x128xf32>
    %240 = arith.negf %239 : vector<16x128xf32>
    %241 = math.exp %240 : vector<16x128xf32>
    %cst_63 = arith.constant 1.000000e+00 : f32
    %242 = vector.broadcast %cst_63 : f32 to vector<16x128xf32>
    %243 = arith.addf %242, %241 : vector<16x128xf32>
    %244 = arith.divf %242, %243 : vector<16x128xf32>
    %245 = vector.extract_strided_slice %238 {offsets = [0, 128], sizes = [16, 128], strides = [1, 1]} : vector<16x512xf32> to vector<16x128xf32>
    %246 = arith.negf %245 : vector<16x128xf32>
    %247 = math.exp %246 : vector<16x128xf32>
    %cst_64 = arith.constant 1.000000e+00 : f32
    %248 = vector.broadcast %cst_64 : f32 to vector<16x128xf32>
    %249 = arith.addf %248, %247 : vector<16x128xf32>
    %250 = arith.divf %248, %249 : vector<16x128xf32>
    %251 = vector.extract_strided_slice %238 {offsets = [0, 256], sizes = [16, 128], strides = [1, 1]} : vector<16x512xf32> to vector<16x128xf32>
    %252 = math.tanh %251 : vector<16x128xf32>
    %253 = vector.extract_strided_slice %238 {offsets = [0, 384], sizes = [16, 128], strides = [1, 1]} : vector<16x512xf32> to vector<16x128xf32>
    %254 = arith.negf %253 : vector<16x128xf32>
    %255 = math.exp %254 : vector<16x128xf32>
    %cst_65 = arith.constant 1.000000e+00 : f32
    %256 = vector.broadcast %cst_65 : f32 to vector<16x128xf32>
    %257 = arith.addf %256, %255 : vector<16x128xf32>
    %258 = arith.divf %256, %257 : vector<16x128xf32>
    %259 = arith.mulf %250, %228 : vector<16x128xf32>
    %260 = arith.mulf %244, %252 : vector<16x128xf32>
    %261 = arith.addf %259, %260 : vector<16x128xf32>
    %262 = math.tanh %261 : vector<16x128xf32>
    %263 = arith.mulf %258, %262 : vector<16x128xf32>
    %c7_66 = arith.constant 7 : index
    %c0_67 = arith.constant 0 : index
    %264 = vector.load %arg3[%c7_66, %c0_67] : memref<8x128xf32, #tpu.memory_space<vmem>>, vector<1x128xf32>
    %265 = vector.broadcast %264 : vector<1x128xf32> to vector<16x128xf32>
    %266 = arith.mulf %263, %265 : vector<16x128xf32>
    %267 = arith.addf %234, %266 : vector<16x128xf32>
    %cst_68 = arith.constant dense<0.000000e+00> : vector<16xf32>
    %268 = vector.multi_reduction <add>, %267, %cst_68 [1] : vector<16x128xf32> to vector<16xf32>
    %269 = vector.shape_cast %268 : vector<16xf32> to vector<16x1xf32>
    %c0_69 = arith.constant 0 : index
    %c0_70 = arith.constant 0 : index
    %270 = vector.load %arg4[%c0_69, %c0_70] : memref<1x1xf32, #tpu.memory_space<vmem>>, vector<1x1xf32>
    %271 = vector.broadcast %270 : vector<1x1xf32> to vector<16x1xf32>
    %272 = arith.addf %269, %271 : vector<16x1xf32>
    %c0_71 = arith.constant 0 : index
    %c0_72 = arith.constant 0 : index
    %273 = vector.load %arg5[%c0_71, %c0_72] : memref<16x1xf32, #tpu.memory_space<vmem>>, vector<16x1xf32>
    tpu.vector_store %arg5[%c0_71, %c0_72], %272 {strides = array<i32>} : memref<16x1xf32, #tpu.memory_space<vmem>>, vector<16x1xf32>,
    return
  }
  func.func @transform_0(%arg0: i32) -> (i32, i32, i32) {
    %c0_i32 = arith.constant 0 : i32
    %c0_i32_0 = arith.constant 0 : i32
    %c0_i32_1 = arith.constant 0 : i32
    return %c0_i32, %arg0, %c0_i32_0 : i32, i32, i32
  }
  func.func @transform_1(%arg0: i32) -> (i32, i32) {
    %c0_i32 = arith.constant 0 : i32
    %c0_i32_0 = arith.constant 0 : i32
    %c0_i32_1 = arith.constant 0 : i32
    return %c0_i32, %c0_i32_0 : i32, i32
  }
  func.func @transform_2(%arg0: i32) -> (i32, i32) {
    %c0_i32 = arith.constant 0 : i32
    %c0_i32_0 = arith.constant 0 : i32
    %c0_i32_1 = arith.constant 0 : i32
    return %c0_i32, %c0_i32_0 : i32, i32
  }
  func.func @transform_3(%arg0: i32) -> (i32, i32) {
    %c0_i32 = arith.constant 0 : i32
    %c0_i32_0 = arith.constant 0 : i32
    %c0_i32_1 = arith.constant 0 : i32
    return %c0_i32, %c0_i32_0 : i32, i32
  }
  func.func @transform_4(%arg0: i32) -> (i32, i32) {
    %c0_i32 = arith.constant 0 : i32
    %c0_i32_0 = arith.constant 0 : i32
    return %arg0, %c0_i32 : i32, i32
  }
}

</mosaic_0001>

<llo_original>
// kernel: tpu_custom_call.1
$region0: #{tpu_custom_call.1}
  #allocation0 [shape = 'u32[]', space=smem, size = 0x4, offset = 0x4, fixed_abs, tag = 'smem constant byte address 0x4 - core index']
  #allocation1 [shape = 'u32[72,128]{1,0:T(1,128)}', space=vmem, size = 0x9000, scoped, tag = 'internal scratch']
  #allocation2 [shape = 'f32[1,1]{1,0:T(1,128)S(1)}', space=vmem, size = 0x200, scoped, tag = 'scoped memory for tpu_custom_call.1']
  %s0 = inlined_call_operand.hbm [shape: f32[8,16,512], index: 0, kind: input, shape index: {}]
  %s1 = inlined_call_operand.hbm [shape: f32[128,512], index: 1, kind: input, shape index: {}]
  %s2 = inlined_call_operand.hbm [shape: f32[8,128], index: 2, kind: input, shape index: {}]
  %s3 = inlined_call_operand.<no memory space> [shape: f32[1,1], index: 3, kind: input, shape index: {}]
  %s4 = inlined_call_operand.vmem [shape: f32[16,1], index: 4, kind: output, shape index: {}]
  %s5 = sld [smem:[#allocation0]]
  $region38: #{tpu_custom_call.1} parent=0
    _
  %s7 = ssub.s32 1, %s5
  %s8 = scalar_select 0, %s7, %s5
  %v9 = vstv %s3
  %10 = vst [vmem:[#allocation2] sm:$0x1] %v9
  $region1: #{tpu_custom_call.1} parent=0
    #allocation3 [shape = 'u8[262144]{0}', space=vmem, size = 0x40000, scoped, tag = 'input window, operand 0, single buffered']
    #allocation4 [shape = 's32[1]{0}', space=sflag, size = 0x4, scoped, tag = 'scoped memory for tpu_custom_call.1']
    #allocation5 [shape = 'u8[262144]{0}', space=vmem, size = 0x40000, scoped, tag = 'input window, operand 1, single buffered']
    #allocation6 [shape = 's32[1]{0}', space=sflag, size = 0x4, scoped, tag = 'scoped memory for tpu_custom_call.1']
    #allocation7 [shape = 'u8[4096]{0}', space=vmem, size = 0x1000, scoped, tag = 'input window, operand 2, single buffered']
    %11 = vsyncpa [#allocation4], 0
    %12 = vsyncpa [#allocation6], 0
    // Predicated region
    $region2: #{tpu_custom_call.1} parent=1 // pred_check
      _
    $region3: #{tpu_custom_call.1} parent=1 // pred_check_branch
      %14 = sbr.rel (0) target = $region5
    $region4: #{tpu_custom_call.1} parent=1 // pred_region
      %16 = vsyncadd [#allocation4], 0
      %s17 = sshll.u32 %s0, 4
      %s18 = int_to_ptr.hbm [resolvable:$true] %s17
      %s19 = sshll.u32 [#allocation3], 4
      %s20 = int_to_ptr.vmem [resolvable:$true] %s19
      %25 = dma.hbm_to_vmem [thread:$0]  %s18, 8192, %s20, [#allocation4], 512, 512, 32
    $region5: #{tpu_custom_call.1} parent=1 // pred_fallthru
      _
    // Predicated region
    $region6: #{tpu_custom_call.1} parent=1 // pred_check
      _
    $region7: #{tpu_custom_call.1} parent=1 // pred_check_branch
      %27 = sbr.rel (0) target = $region9
    $region8: #{tpu_custom_call.1} parent=1 // pred_region
      %29 = vsyncadd [#allocation6], 0
      %s30 = sshll.u32 %s1, 4
      %s31 = int_to_ptr.hbm [resolvable:$true] %s30
      %s32 = sshll.u32 [#allocation5], 4
      %s33 = int_to_ptr.vmem [resolvable:$true] %s32
      %38 = dma.hbm_to_vmem [thread:$0]  %s31, 8192, %s33, [#allocation6], 512, 512, 32
    $region9: #{tpu_custom_call.1} parent=1 // pred_fallthru
      _
    // Predicated region
    $region10: #{tpu_custom_call.1} parent=1 // pred_check
      _
    $region11: #{tpu_custom_call.1} parent=1 // pred_check_branch
      %40 = sbr.rel (0) target = $region13
    $region12: #{tpu_custom_call.1} parent=1 // pred_region
      %42 = vsyncadd [#allocation6], 0
      %s44 = sshll.u32 %s2, 4
      %s45 = int_to_ptr.hbm [resolvable:$true] %s44
      %s46 = sshll.u32 [#allocation7], 4
      %s47 = int_to_ptr.vmem [resolvable:$true] %s46
      %49 = dma.hbm_to_vmem [thread:$0]  %s45, 128, %s47, [#allocation6]
    $region13: #{tpu_custom_call.1} parent=1 // pred_fallthru
      _
    // Predicated region
    $region14: #{tpu_custom_call.1} parent=1 // pred_check
      _
    $region15: #{tpu_custom_call.1} parent=1 // pred_check_branch
      %51 = sbr.rel (0) target = $region17
    $region16: #{tpu_custom_call.1} parent=1 // pred_region
      _
    $region17: #{tpu_custom_call.1} parent=1 // pred_fallthru
      _
    // Predicated region
    $region18: #{tpu_custom_call.1} parent=1 // pred_check
      _
    $region19: #{tpu_custom_call.1} parent=1 // pred_check_branch
      %53 = sbr.rel (0) target = $region21
    $region20: #{tpu_custom_call.1} parent=1 // pred_region
      %55 = dma.done [#allocation4], 8192
    $region21: #{tpu_custom_call.1} parent=1 // pred_fallthru
      _
    // Predicated region
    $region22: #{tpu_custom_call.1} parent=1 // pred_check
      _
    $region23: #{tpu_custom_call.1} parent=1 // pred_check_branch
      %57 = sbr.rel (0) target = $region25
    $region24: #{tpu_custom_call.1} parent=1 // pred_region
      %59 = dma.done [#allocation6], 8192
    $region25: #{tpu_custom_call.1} parent=1 // pred_fallthru
      _
    // Predicated region
    $region26: #{tpu_custom_call.1} parent=1 // pred_check
      _
    $region27: #{tpu_custom_call.1} parent=1 // pred_check_branch
      %61 = sbr.rel (0) target = $region29
    $region28: #{tpu_custom_call.1} parent=1 // pred_region
      %63 = dma.done [#allocation6], 128
    $region29: #{tpu_custom_call.1} parent=1 // pred_fallthru
      _
    %v64 = vld [vmem:[#allocation5] sm:$0xff]
    %v65 = vld [vmem:[#allocation5 + $0x8] sm:$0xff]
    %v66 = vld [vmem:[#allocation5 + $0x10] sm:$0xff]
    %v67 = vld [vmem:[#allocation5 + $0x18] sm:$0xff]
    %v68 = vld [vmem:[#allocation5 + $0x20] sm:$0xff]
    %v69 = vld [vmem:[#allocation5 + $0x28] sm:$0xff]
    %v70 = vld [vmem:[#allocation5 + $0x30] sm:$0xff]
    %v71 = vld [vmem:[#allocation5 + $0x38] sm:$0xff]
    %v72 = vld [vmem:[#allocation5 + $0x40] sm:$0xff]
    %v73 = vld [vmem:[#allocation5 + $0x48] sm:$0xff]
    %v74 = vld [vmem:[#allocation5 + $0x50] sm:$0xff]
    %v75 = vld [vmem:[#allocation5 + $0x58] sm:$0xff]
    %v76 = vld [vmem:[#allocation5 + $0x60] sm:$0xff]
    %v77 = vld [vmem:[#allocation5 + $0x68] sm:$0xff]
    %v78 = vld [vmem:[#allocation5 + $0x70] sm:$0xff]
    %v79 = vld [vmem:[#allocation5 + $0x78] sm:$0xff]
    %v80 = vld [vmem:[#allocation5 + $0x80] sm:$0xff]
    %v81 = vld [vmem:[#allocation5 + $0x88] sm:$0xff]
    %v82 = vld [vmem:[#allocation5 + $0x90] sm:$0xff]
    %v83 = vld [vmem:[#allocation5 + $0x98] sm:$0xff]
    %v84 = vld [vmem:[#allocation5 + $0xa0] sm:$0xff]
    %v85 = vld [vmem:[#allocation5 + $0xa8] sm:$0xff]
    %v86 = vld [vmem:[#allocation5 + $0xb0] sm:$0xff]
    %v87 = vld [vmem:[#allocation5 + $0xb8] sm:$0xff]
    %v88 = vld [vmem:[#allocation5 + $0xc0] sm:$0xff]
    %v89 = vld [vmem:[#allocation5 + $0xc8] sm:$0xff]
    %v90 = vld [vmem:[#allocation5 + $0xd0] sm:$0xff]
    %v91 = vld [vmem:[#allocation5 + $0xd8] sm:$0xff]
    %v92 = vld [vmem:[#allocation5 + $0xe0] sm:$0xff]
    %v93 = vld [vmem:[#allocation5 + $0xe8] sm:$0xff]
    %v94 = vld [vmem:[#allocation5 + $0xf0] sm:$0xff]
    %v95 = vld [vmem:[#allocation5 + $0xf8] sm:$0xff]
    %v96 = vld [vmem:[#allocation5 + $0x100] sm:$0xff]
    %v97 = vld [vmem:[#allocation5 + $0x108] sm:$0xff]
    %v98 = vld [vmem:[#allocation5 + $0x110] sm:$0xff]
    %v99 = vld [vmem:[#allocation5 + $0x118] sm:$0xff]
    %v100 = vld [vmem:[#allocation5 + $0x120] sm:$0xff]
    %v101 = vld [vmem:[#allocation5 + $0x128] sm:$0xff]
    %v102 = vld [vmem:[#allocation5 + $0x130] sm:$0xff]
    %v103 = vld [vmem:[#allocation5 + $0x138] sm:$0xff]
    %v104 = vld [vmem:[#allocation5 + $0x140] sm:$0xff]
    %v105 = vld [vmem:[#allocation5 + $0x148] sm:$0xff]
    %v106 = vld [vmem:[#allocation5 + $0x150] sm:$0xff]
    %v107 = vld [vmem:[#allocation5 + $0x158] sm:$0xff]
    %v108 = vld [vmem:[#allocation5 + $0x160] sm:$0xff]
    %v109 = vld [vmem:[#allocation5 + $0x168] sm:$0xff]
    %v110 = vld [vmem:[#allocation5 + $0x170] sm:$0xff]
    %v111 = vld [vmem:[#allocation5 + $0x178] sm:$0xff]
    %v112 = vld [vmem:[#allocation5 + $0x180] sm:$0xff]
    %v113 = vld [vmem:[#allocation5 + $0x188] sm:$0xff]
    %v114 = vld [vmem:[#allocation5 + $0x190] sm:$0xff]
    %v115 = vld [vmem:[#allocation5 + $0x198] sm:$0xff]
    %v116 = vld [vmem:[#allocation5 + $0x1a0] sm:$0xff]
    %v117 = vld [vmem:[#allocation5 + $0x1a8] sm:$0xff]
    %v118 = vld [vmem:[#allocation5 + $0x1b0] sm:$0xff]
    %v119 = vld [vmem:[#allocation5 + $0x1b8] sm:$0xff]
    %v120 = vld [vmem:[#allocation5 + $0x1c0] sm:$0xff]
    %v121 = vld [vmem:[#allocation5 + $0x1c8] sm:$0xff]
    %v122 = vld [vmem:[#allocation5 + $0x1d0] sm:$0xff]
    %v123 = vld [vmem:[#allocation5 + $0x1d8] sm:$0xff]
    %v124 = vld [vmem:[#allocation5 + $0x1e0] sm:$0xff]
    %v125 = vld [vmem:[#allocation5 + $0x1e8] sm:$0xff]
    %v126 = vld [vmem:[#allocation5 + $0x1f0] sm:$0xff]
    %v127 = vld [vmem:[#allocation5 + $0x1f8] sm:$0xff]
    %v128 = vld [vmem:[#allocation3] sm:$0xff]
    %v129 = vld [vmem:[#allocation3 + $0x8] sm:$0xff]
    %v130 = vld [vmem:[#allocation3 + $0x10] sm:$0xff]
    %v131 = vld [vmem:[#allocation3 + $0x18] sm:$0xff]
    %v132 = vld [vmem:[#allocation3 + $0x20] sm:$0xff]
    %v133 = vld [vmem:[#allocation3 + $0x28] sm:$0xff]
    %v134 = vld [vmem:[#allocation3 + $0x30] sm:$0xff]
    %v135 = vld [vmem:[#allocation3 + $0x38] sm:$0xff]
    %136 = vmatpush.msra.mxu0 %v124
    %137 = vmatpush.msra.mxu0 %v120
    %138 = vmatpush.msra.mxu0 %v116
    %139 = vmatpush.msra.mxu0 %v112
    %140 = vmatpush.msra.mxu0 %v108
    %141 = vmatpush.msra.mxu0 %v104
    %142 = vmatpush.msra.mxu0 %v100
    %143 = vmatpush.msra.mxu0 %v96
    %144 = vmatpush.msra.mxu0 %v92
    %145 = vmatpush.msra.mxu0 %v88
    %146 = vmatpush.msra.mxu0 %v84
    %147 = vmatpush.msra.mxu0 %v80
    %148 = vmatpush.msra.mxu0 %v76
    %149 = vmatpush.msra.mxu0 %v72
    %150 = vmatpush.msra.mxu0 %v68
    %151 = vmatpush.msra.mxu0 %v64
    %152 = vmatmul.f32.gmra.mxu0 0.0
    %v153 = vpop.f32.mrf.mxu0
    %v154 = vadd.f32 0.0, %v153
    %155 = vmatmul.f32.gmra.mxu0 0.0
    %v156 = vpop.f32.mrf.mxu0
    %v157 = vadd.f32 0.0, %v156
    %158 = vdwg.mxu0
    %159 = vmatpush.msra.mxu0 %v125
    %160 = vmatpush.msra.mxu0 %v121
    %161 = vmatpush.msra.mxu0 %v117
    %162 = vmatpush.msra.mxu0 %v113
    %163 = vmatpush.msra.mxu0 %v109
    %164 = vmatpush.msra.mxu0 %v105
    %165 = vmatpush.msra.mxu0 %v101
    %166 = vmatpush.msra.mxu0 %v97
    %167 = vmatpush.msra.mxu0 %v93
    %168 = vmatpush.msra.mxu0 %v89
    %169 = vmatpush.msra.mxu0 %v85
    %170 = vmatpush.msra.mxu0 %v81
    %171 = vmatpush.msra.mxu0 %v77
    %172 = vmatpush.msra.mxu0 %v73
    %173 = vmatpush.msra.mxu0 %v69
    %174 = vmatpush.msra.mxu0 %v65
    %175 = vmatmul.f32.gmra.mxu0 0.0
    %v176 = vpop.f32.mrf.mxu0
    %v177 = vadd.f32 0.0, %v176
    %178 = vmatmul.f32.gmra.mxu0 0.0
    %v179 = vpop.f32.mrf.mxu0
    %v180 = vadd.f32 0.0, %v179
    %181 = vdwg.mxu0
    %182 = vmatpush.msra.mxu0 %v126
    %183 = vmatpush.msra.mxu0 %v122
    %184 = vmatpush.msra.mxu0 %v118
    %185 = vmatpush.msra.mxu0 %v114
    %186 = vmatpush.msra.mxu0 %v110
    %187 = vmatpush.msra.mxu0 %v106
    %188 = vmatpush.msra.mxu0 %v102
    %189 = vmatpush.msra.mxu0 %v98
    %190 = vmatpush.msra.mxu0 %v94
    %191 = vmatpush.msra.mxu0 %v90
    %192 = vmatpush.msra.mxu0 %v86
    %193 = vmatpush.msra.mxu0 %v82
    %194 = vmatpush.msra.mxu0 %v78
    %195 = vmatpush.msra.mxu0 %v74
    %196 = vmatpush.msra.mxu0 %v70
    %197 = vmatpush.msra.mxu0 %v66
    %198 = vmatmul.f32.gmra.mxu0 0.0
    %v199 = vpop.f32.mrf.mxu0
    %v200 = vadd.f32 0.0, %v199
    %201 = vmatmul.f32.gmra.mxu0 0.0
    %v202 = vpop.f32.mrf.mxu0
    %v203 = vadd.f32 0.0, %v202
    %204 = vdwg.mxu0
    %205 = vmatpush.msra.mxu0 %v127
    %206 = vmatpush.msra.mxu0 %v123
    %207 = vmatpush.msra.mxu0 %v119
    %208 = vmatpush.msra.mxu0 %v115
    %209 = vmatpush.msra.mxu0 %v111
    %210 = vmatpush.msra.mxu0 %v107
    %211 = vmatpush.msra.mxu0 %v103
    %212 = vmatpush.msra.mxu0 %v99
    %213 = vmatpush.msra.mxu0 %v95
    %214 = vmatpush.msra.mxu0 %v91
    %215 = vmatpush.msra.mxu0 %v87
    %216 = vmatpush.msra.mxu0 %v83
    %217 = vmatpush.msra.mxu0 %v79
    %218 = vmatpush.msra.mxu0 %v75
    %219 = vmatpush.msra.mxu0 %v71
    %220 = vmatpush.msra.mxu0 %v67
    %221 = vmatmul.f32.gmra.mxu0 0.0
    %v222 = vpop.f32.mrf.mxu0
    %v223 = vadd.f32 0.0, %v222
    %224 = vmatmul.f32.gmra.mxu0 0.0
    %v225 = vpop.f32.mrf.mxu0
    %v226 = vadd.f32 0.0, %v225
    %227 = vdwg.mxu0
    %v228 = vadd.f32 %v128, %v154
    %v229 = vadd.f32 %v129, %v177
    %v230 = vadd.f32 %v130, %v200
    %v231 = vadd.f32 %v131, %v223
    %v232 = vadd.f32 %v132, %v157
    %v233 = vadd.f32 %v133, %v180
    %v234 = vadd.f32 %v134, %v203
    %v235 = vadd.f32 %v135, %v226
    %v236 = vxor.u32 %v228, 2147483648
    %v237 = vxor.u32 %v232, 2147483648
    %v238 = vmul.f32 %v236, 1.442695
    %v239 = vpow.pop %v238
    %v240 = vmul.f32 %v237, 1.442695
    %v241 = vpow.pop %v240
    %v242 = vadd.f32 %v239, 1.0
    %v243 = vadd.f32 %v241, 1.0
    %v244 = vrcp.pop %v242
    %v245 = vmul.f32 %v242, %v244
    %v246 = vsub.f32 1.0, %v245
    %v247 = vmul.f32 %v244, %v246
    %v248 = vadd.f32 %v244, %v247
    %vm249 = vweird.f32 %v242
    %vm250 = vweird.f32 %v244
    %vm251 = vmor %vm249, %vm250
    %v252 = vsel %vm251, %v244, %v248
    %v253 = vand.u32 2147483647, %v242
    %vm254 = vcmp.eq.f32.partialorder %v253, 8.507059e+37
    %v255 = vand.u32 %v242, 2147483648
    %v256 = vor.u32 1.1754944e-38, %v255
    %v257 = vsel %vm254, %v256, %v252
    %v258 = vmul.f32 1.0, %v257
    %v259 = vrcp.pop %v243
    %v260 = vmul.f32 %v243, %v259
    %v261 = vsub.f32 1.0, %v260
    %v262 = vmul.f32 %v259, %v261
    %v263 = vadd.f32 %v259, %v262
    %vm264 = vweird.f32 %v243
    %vm265 = vweird.f32 %v259
    %vm266 = vmor %vm264, %vm265
    %v267 = vsel %vm266, %v259, %v263
    %v268 = vand.u32 2147483647, %v243
    %vm269 = vcmp.eq.f32.partialorder %v268, 8.507059e+37
    %v270 = vand.u32 %v243, 2147483648
    %v271 = vor.u32 1.1754944e-38, %v270
    %v272 = vsel %vm269, %v271, %v267
    %v273 = vmul.f32 1.0, %v272
    %v274 = vxor.u32 %v229, 2147483648
    %v275 = vxor.u32 %v233, 2147483648
    %v276 = vmul.f32 %v274, 1.442695
    %v277 = vpow.pop %v276
    %v278 = vmul.f32 %v275, 1.442695
    %v279 = vpow.pop %v278
    %v280 = vadd.f32 %v277, 1.0
    %v281 = vadd.f32 %v279, 1.0
    %v282 = vrcp.pop %v280
    %v283 = vmul.f32 %v280, %v282
    %v284 = vsub.f32 1.0, %v283
    %v285 = vmul.f32 %v282, %v284
    %v286 = vadd.f32 %v282, %v285
    %vm287 = vweird.f32 %v280
    %vm288 = vweird.f32 %v282
    %vm289 = vmor %vm287, %vm288
    %v290 = vsel %vm289, %v282, %v286
    %v291 = vand.u32 2147483647, %v280
    %vm292 = vcmp.eq.f32.partialorder %v291, 8.507059e+37
    %v293 = vand.u32 %v280, 2147483648
    %v294 = vor.u32 1.1754944e-38, %v293
    %v295 = vsel %vm292, %v294, %v290
    %v296 = vmul.f32 1.0, %v295
    %v297 = vrcp.pop %v281
    %v298 = vmul.f32 %v281, %v297
    %v299 = vsub.f32 1.0, %v298
    %v300 = vmul.f32 %v297, %v299
    %v301 = vadd.f32 %v297, %v300
    %vm302 = vweird.f32 %v281
    %vm303 = vweird.f32 %v297
    %vm304 = vmor %vm302, %vm303
    %v305 = vsel %vm304, %v297, %v301
    %v306 = vand.u32 2147483647, %v281
    %vm307 = vcmp.eq.f32.partialorder %v306, 8.507059e+37
    %v308 = vand.u32 %v281, 2147483648
    %v309 = vor.u32 1.1754944e-38, %v308
    %v310 = vsel %vm307, %v309, %v305
    %v311 = vmul.f32 1.0, %v310
    %v312 = vtanh.pop %v230
    %v313 = vtanh.pop %v234
    %v314 = vxor.u32 %v231, 2147483648
    %v315 = vxor.u32 %v235, 2147483648
    %v316 = vmul.f32 %v314, 1.442695
    %v317 = vpow.pop %v316
    %v318 = vmul.f32 %v315, 1.442695
    %v319 = vpow.pop %v318
    %v320 = vadd.f32 %v317, 1.0
    %v321 = vadd.f32 %v319, 1.0
    %v322 = vrcp.pop %v320
    %v323 = vmul.f32 %v320, %v322
    %v324 = vsub.f32 1.0, %v323
    %v325 = vmul.f32 %v322, %v324
    %v326 = vadd.f32 %v322, %v325
    %vm327 = vweird.f32 %v320
    %vm328 = vweird.f32 %v322
    %vm329 = vmor %vm327, %vm328
    %v330 = vsel %vm329, %v322, %v326
    %v331 = vand.u32 2147483647, %v320
    %vm332 = vcmp.eq.f32.partialorder %v331, 8.507059e+37
    %v333 = vand.u32 %v320, 2147483648
    %v334 = vor.u32 1.1754944e-38, %v333
    %v335 = vsel %vm332, %v334, %v330
    %v336 = vmul.f32 1.0, %v335
    %v337 = vrcp.pop %v321
    %v338 = vmul.f32 %v321, %v337
    %v339 = vsub.f32 1.0, %v338
    %v340 = vmul.f32 %v337, %v339
    %v341 = vadd.f32 %v337, %v340
    %vm342 = vweird.f32 %v321
    %vm343 = vweird.f32 %v337
    %vm344 = vmor %vm342, %vm343
    %v345 = vsel %vm344, %v337, %v341
    %v346 = vand.u32 2147483647, %v321
    %vm347 = vcmp.eq.f32.partialorder %v346, 8.507059e+37
    %v348 = vand.u32 %v321, 2147483648
    %v349 = vor.u32 1.1754944e-38, %v348
    %v350 = vsel %vm347, %v349, %v345
    %v351 = vmul.f32 1.0, %v350
    %v352 = vmul.f32 %v296, 0.0
    %v353 = vmul.f32 %v311, 0.0
    %v354 = vmul.f32 %v258, %v312
    %v355 = vmul.f32 %v273, %v313
    %v356 = vadd.f32 %v352, %v354
    %v357 = vadd.f32 %v353, %v355
    %v358 = vtanh.pop %v356
    %v359 = vtanh.pop %v357
    %v360 = vmul.f32 %v336, %v358
    %v361 = vmul.f32 %v351, %v359
    %v362 = vld [vmem:[#allocation7] sm:$0x1]
    %v363 = vperm.slane %v362, 0
    %v364 = vmul.f32 %v360, %v363
    %v365 = vmul.f32 %v361, %v363
    %v366 = vadd.f32 %v364, 0.0
    %v367 = vadd.f32 %v365, 0.0
    %s368 = scalar_lea.vmem [#allocation3], 64
    %v369 = vld [vmem:[%s368] sm:$0xff]
    %v370 = vld [vmem:[%s368 + $0x8] sm:$0xff]
    %v371 = vld [vmem:[%s368 + $0x10] sm:$0xff]
    %v372 = vld [vmem:[%s368 + $0x18] sm:$0xff]
    %v373 = vld [vmem:[%s368 + $0x20] sm:$0xff]
    %v374 = vld [vmem:[%s368 + $0x28] sm:$0xff]
    %v375 = vld [vmem:[%s368 + $0x30] sm:$0xff]
    %v376 = vld [vmem:[%s368 + $0x38] sm:$0xff]
    %377 = vmatpush.msra.mxu0 %v124
    %378 = vmatpush.msra.mxu0 %v120
    %379 = vmatpush.msra.mxu0 %v116
    %380 = vmatpush.msra.mxu0 %v112
    %381 = vmatpush.msra.mxu0 %v108
    %382 = vmatpush.msra.mxu0 %v104
    %383 = vmatpush.msra.mxu0 %v100
    %384 = vmatpush.msra.mxu0 %v96
    %385 = vmatpush.msra.mxu0 %v92
    %386 = vmatpush.msra.mxu0 %v88
    %387 = vmatpush.msra.mxu0 %v84
    %388 = vmatpush.msra.mxu0 %v80
    %389 = vmatpush.msra.mxu0 %v76
    %390 = vmatpush.msra.mxu0 %v72
    %391 = vmatpush.msra.mxu0 %v68
    %392 = vmatpush.msra.mxu0 %v64
    %393 = vmatmul.f32.gmra.mxu0 %v360
    %v394 = vpop.f32.mrf.mxu0
    %v395 = vadd.f32 0.0, %v394
    %396 = vmatmul.f32.gmra.mxu0 %v361
    %v397 = vpop.f32.mrf.mxu0
    %v398 = vadd.f32 0.0, %v397
    %399 = vdwg.mxu0
    %400 = vmatpush.msra.mxu0 %v125
    %401 = vmatpush.msra.mxu0 %v121
    %402 = vmatpush.msra.mxu0 %v117
    %403 = vmatpush.msra.mxu0 %v113
    %404 = vmatpush.msra.mxu0 %v109
    %405 = vmatpush.msra.mxu0 %v105
    %406 = vmatpush.msra.mxu0 %v101
    %407 = vmatpush.msra.mxu0 %v97
    %408 = vmatpush.msra.mxu0 %v93
    %409 = vmatpush.msra.mxu0 %v89
    %410 = vmatpush.msra.mxu0 %v85
    %411 = vmatpush.msra.mxu0 %v81
    %412 = vmatpush.msra.mxu0 %v77
    %413 = vmatpush.msra.mxu0 %v73
    %414 = vmatpush.msra.mxu0 %v69
    %415 = vmatpush.msra.mxu0 %v65
    %416 = vmatmul.f32.gmra.mxu0 %v360
    %v417 = vpop.f32.mrf.mxu0
    %v418 = vadd.f32 0.0, %v417
    %419 = vmatmul.f32.gmra.mxu0 %v361
    %v420 = vpop.f32.mrf.mxu0
    %v421 = vadd.f32 0.0, %v420
    %422 = vdwg.mxu0
    %423 = vmatpush.msra.mxu0 %v126
    %424 = vmatpush.msra.mxu0 %v122
    %425 = vmatpush.msra.mxu0 %v118
    %426 = vmatpush.msra.mxu0 %v114
    %427 = vmatpush.msra.mxu0 %v110
    %428 = vmatpush.msra.mxu0 %v106
    %429 = vmatpush.msra.mxu0 %v102
    %430 = vmatpush.msra.mxu0 %v98
    %431 = vmatpush.msra.mxu0 %v94
    %432 = vmatpush.msra.mxu0 %v90
    %433 = vmatpush.msra.mxu0 %v86
    %434 = vmatpush.msra.mxu0 %v82
    %435 = vmatpush.msra.mxu0 %v78
    %436 = vmatpush.msra.mxu0 %v74
    %437 = vmatpush.msra.mxu0 %v70
    %438 = vmatpush.msra.mxu0 %v66
    %439 = vmatmul.f32.gmra.mxu0 %v360
    %v440 = vpop.f32.mrf.mxu0
    %v441 = vadd.f32 0.0, %v440
    %442 = vmatmul.f32.gmra.mxu0 %v361
    %v443 = vpop.f32.mrf.mxu0
    %v444 = vadd.f32 0.0, %v443
    %445 = vdwg.mxu0
    %446 = vmatpush.msra.mxu0 %v127
    %447 = vmatpush.msra.mxu0 %v123
    %448 = vmatpush.msra.mxu0 %v119
    %449 = vmatpush.msra.mxu0 %v115
    %450 = vmatpush.msra.mxu0 %v111
    %451 = vmatpush.msra.mxu0 %v107
    %452 = vmatpush.msra.mxu0 %v103
    %453 = vmatpush.msra.mxu0 %v99
    %454 = vmatpush.msra.mxu0 %v95
    %455 = vmatpush.msra.mxu0 %v91
    %456 = vmatpush.msra.mxu0 %v87
    %457 = vmatpush.msra.mxu0 %v83
    %458 = vmatpush.msra.mxu0 %v79
    %459 = vmatpush.msra.mxu0 %v75
    %460 = vmatpush.msra.mxu0 %v71
    %461 = vmatpush.msra.mxu0 %v67
    %462 = vmatmul.f32.gmra.mxu0 %v360
    %v463 = vpop.f32.mrf.mxu0
    %v464 = vadd.f32 0.0, %v463
    %465 = vmatmul.f32.gmra.mxu0 %v361
    %v466 = vpop.f32.mrf.mxu0
    %v467 = vadd.f32 0.0, %v466
    %468 = vdwg.mxu0
    %v469 = vadd.f32 %v369, %v395
    %v470 = vadd.f32 %v370, %v418
    %v471 = vadd.f32 %v371, %v441
    %v472 = vadd.f32 %v372, %v464
    %v473 = vadd.f32 %v373, %v398
    %v474 = vadd.f32 %v374, %v421
    %v475 = vadd.f32 %v375, %v444
    %v476 = vadd.f32 %v376, %v467
    %v477 = vxor.u32 %v469, 2147483648
    %v478 = vxor.u32 %v473, 2147483648
    %v479 = vmul.f32 %v477, 1.442695
    %v480 = vpow.pop %v479
    %v481 = vmul.f32 %v478, 1.442695
    %v482 = vpow.pop %v481
    %v483 = vadd.f32 %v480, 1.0
    %v484 = vadd.f32 %v482, 1.0
    %v485 = vrcp.pop %v483
    %v486 = vmul.f32 %v483, %v485
    %v487 = vsub.f32 1.0, %v486
    %v488 = vmul.f32 %v485, %v487
    %v489 = vadd.f32 %v485, %v488
    %vm490 = vweird.f32 %v483
    %vm491 = vweird.f32 %v485
    %vm492 = vmor %vm490, %vm491
    %v493 = vsel %vm492, %v485, %v489
    %v494 = vand.u32 2147483647, %v483
    %vm495 = vcmp.eq.f32.partialorder %v494, 8.507059e+37
    %v496 = vand.u32 %v483, 2147483648
    %v497 = vor.u32 1.1754944e-38, %v496
    %v498 = vsel %vm495, %v497, %v493
    %v499 = vmul.f32 1.0, %v498
    %v500 = vrcp.pop %v484
    %v501 = vmul.f32 %v484, %v500
    %v502 = vsub.f32 1.0, %v501
    %v503 = vmul.f32 %v500, %v502
    %v504 = vadd.f32 %v500, %v503
    %vm505 = vweird.f32 %v484
    %vm506 = vweird.f32 %v500
    %vm507 = vmor %vm505, %vm506
    %v508 = vsel %vm507, %v500, %v504
    %v509 = vand.u32 2147483647, %v484
    %vm510 = vcmp.eq.f32.partialorder %v509, 8.507059e+37
    %v511 = vand.u32 %v484, 2147483648
    %v512 = vor.u32 1.1754944e-38, %v511
    %v513 = vsel %vm510, %v512, %v508
    %v514 = vmul.f32 1.0, %v513
    %v515 = vxor.u32 %v470, 2147483648
    %v516 = vxor.u32 %v474, 2147483648
    %v517 = vmul.f32 %v515, 1.442695
    %v518 = vpow.pop %v517
    %v519 = vmul.f32 %v516, 1.442695
    %v520 = vpow.pop %v519
    %v521 = vadd.f32 %v518, 1.0
    %v522 = vadd.f32 %v520, 1.0
    %v523 = vrcp.pop %v521
    %v524 = vmul.f32 %v521, %v523
    %v525 = vsub.f32 1.0, %v524
    %v526 = vmul.f32 %v523, %v525
    %v527 = vadd.f32 %v523, %v526
    %vm528 = vweird.f32 %v521
    %vm529 = vweird.f32 %v523
    %vm530 = vmor %vm528, %vm529
    %v531 = vsel %vm530, %v523, %v527
    %v532 = vand.u32 2147483647, %v521
    %vm533 = vcmp.eq.f32.partialorder %v532, 8.507059e+37
    %v534 = vand.u32 %v521, 2147483648
    %v535 = vor.u32 1.1754944e-38, %v534
    %v536 = vsel %vm533, %v535, %v531
    %v537 = vmul.f32 1.0, %v536
    %v538 = vrcp.pop %v522
    %v539 = vmul.f32 %v522, %v538
    %v540 = vsub.f32 1.0, %v539
    %v541 = vmul.f32 %v538, %v540
    %v542 = vadd.f32 %v538, %v541
    %vm543 = vweird.f32 %v522
    %vm544 = vweird.f32 %v538
    %vm545 = vmor %vm543, %vm544
    %v546 = vsel %vm545, %v538, %v542
    %v547 = vand.u32 2147483647, %v522
    %vm548 = vcmp.eq.f32.partialorder %v547, 8.507059e+37
    %v549 = vand.u32 %v522, 2147483648
    %v550 = vor.u32 1.1754944e-38, %v549
    %v551 = vsel %vm548, %v550, %v546
    %v552 = vmul.f32 1.0, %v551
    %v553 = vtanh.pop %v471
    %v554 = vtanh.pop %v475
    %v555 = vxor.u32 %v472, 2147483648
    %v556 = vxor.u32 %v476, 2147483648
    %v557 = vmul.f32 %v555, 1.442695
    %v558 = vpow.pop %v557
    %v559 = vmul.f32 %v556, 1.442695
    %v560 = vpow.pop %v559
    %v561 = vadd.f32 %v558, 1.0
    %v562 = vadd.f32 %v560, 1.0
    %v563 = vrcp.pop %v561
    %v564 = vmul.f32 %v561, %v563
    %v565 = vsub.f32 1.0, %v564
    %v566 = vmul.f32 %v563, %v565
    %v567 = vadd.f32 %v563, %v566
    %vm568 = vweird.f32 %v561
    %vm569 = vweird.f32 %v563
    %vm570 = vmor %vm568, %vm569
    %v571 = vsel %vm570, %v563, %v567
    %v572 = vand.u32 2147483647, %v561
    %vm573 = vcmp.eq.f32.partialorder %v572, 8.507059e+37
    %v574 = vand.u32 %v561, 2147483648
    %v575 = vor.u32 1.1754944e-38, %v574
    %v576 = vsel %vm573, %v575, %v571
    %v577 = vmul.f32 1.0, %v576
    %v578 = vrcp.pop %v562
    %v579 = vmul.f32 %v562, %v578
    %v580 = vsub.f32 1.0, %v579
    %v581 = vmul.f32 %v578, %v580
    %v582 = vadd.f32 %v578, %v581
    %vm583 = vweird.f32 %v562
    %vm584 = vweird.f32 %v578
    %vm585 = vmor %vm583, %vm584
    %v586 = vsel %vm585, %v578, %v582
    %v587 = vand.u32 2147483647, %v562
    %vm588 = vcmp.eq.f32.partialorder %v587, 8.507059e+37
    %v589 = vand.u32 %v562, 2147483648
    %v590 = vor.u32 1.1754944e-38, %v589
    %v591 = vsel %vm588, %v590, %v586
    %v592 = vmul.f32 1.0, %v591
    %v593 = vmul.f32 %v537, %v356
    %v594 = vmul.f32 %v552, %v357
    %v595 = vmul.f32 %v499, %v553
    %v596 = vmul.f32 %v514, %v554
    %v597 = vadd.f32 %v593, %v595
    %v598 = vadd.f32 %v594, %v596
    %v599 = vtanh.pop %v597
    %v600 = vtanh.pop %v598
    %v601 = vmul.f32 %v577, %v599
    %v602 = vmul.f32 %v592, %v600
    %v603 = vld [vmem:[#allocation7 + $0x1] sm:$0x1]
    %v604 = vperm.slane %v603, 0
    %v605 = vmul.f32 %v601, %v604
    %v606 = vmul.f32 %v602, %v604
    %v607 = vadd.f32 %v366, %v605
    %v608 = vadd.f32 %v367, %v606
    %s609 = scalar_lea.vmem [#allocation3], 128
    %v610 = vld [vmem:[%s609] sm:$0xff]
    %v611 = vld [vmem:[%s609 + $0x8] sm:$0xff]
    %v612 = vld [vmem:[%s609 + $0x10] sm:$0xff]
    %v613 = vld [vmem:[%s609 + $0x18] sm:$0xff]
    %v614 = vld [vmem:[%s609 + $0x20] sm:$0xff]
    %v615 = vld [vmem:[%s609 + $0x28] sm:$0xff]
    %v616 = vld [vmem:[%s609 + $0x30] sm:$0xff]
    %v617 = vld [vmem:[%s609 + $0x38] sm:$0xff]
    %618 = vmatpush.msra.mxu0 %v124
    %619 = vmatpush.msra.mxu0 %v120
    %620 = vmatpush.msra.mxu0 %v116
    %621 = vmatpush.msra.mxu0 %v112
    %622 = vmatpush.msra.mxu0 %v108
    %623 = vmatpush.msra.mxu0 %v104
    %624 = vmatpush.msra.mxu0 %v100
    %625 = vmatpush.msra.mxu0 %v96
    %626 = vmatpush.msra.mxu0 %v92
    %627 = vmatpush.msra.mxu0 %v88
    %628 = vmatpush.msra.mxu0 %v84
    %629 = vmatpush.msra.mxu0 %v80
    %630 = vmatpush.msra.mxu0 %v76
    %631 = vmatpush.msra.mxu0 %v72
    %632 = vmatpush.msra.mxu0 %v68
    %633 = vmatpush.msra.mxu0 %v64
    %634 = vmatmul.f32.gmra.mxu0 %v601
    %v635 = vpop.f32.mrf.mxu0
    %v636 = vadd.f32 0.0, %v635
    %637 = vmatmul.f32.gmra.mxu0 %v602
    %v638 = vpop.f32.mrf.mxu0
    %v639 = vadd.f32 0.0, %v638
    %640 = vdwg.mxu0
    %641 = vmatpush.msra.mxu0 %v125
    %642 = vmatpush.msra.mxu0 %v121
    %643 = vmatpush.msra.mxu0 %v117
    %644 = vmatpush.msra.mxu0 %v113
    %645 = vmatpush.msra.mxu0 %v109
    %646 = vmatpush.msra.mxu0 %v105
    %647 = vmatpush.msra.mxu0 %v101
    %648 = vmatpush.msra.mxu0 %v97
    %649 = vmatpush.msra.mxu0 %v93
    %650 = vmatpush.msra.mxu0 %v89
    %651 = vmatpush.msra.mxu0 %v85
    %652 = vmatpush.msra.mxu0 %v81
    %653 = vmatpush.msra.mxu0 %v77
    %654 = vmatpush.msra.mxu0 %v73
    %655 = vmatpush.msra.mxu0 %v69
    %656 = vmatpush.msra.mxu0 %v65
    %657 = vmatmul.f32.gmra.mxu0 %v601
    %v658 = vpop.f32.mrf.mxu0
    %v659 = vadd.f32 0.0, %v658
    %660 = vmatmul.f32.gmra.mxu0 %v602
    %v661 = vpop.f32.mrf.mxu0
    %v662 = vadd.f32 0.0, %v661
    %663 = vdwg.mxu0
    %664 = vmatpush.msra.mxu0 %v126
    %665 = vmatpush.msra.mxu0 %v122
    %666 = vmatpush.msra.mxu0 %v118
    %667 = vmatpush.msra.mxu0 %v114
    %668 = vmatpush.msra.mxu0 %v110
    %669 = vmatpush.msra.mxu0 %v106
    %670 = vmatpush.msra.mxu0 %v102
    %671 = vmatpush.msra.mxu0 %v98
    %672 = vmatpush.msra.mxu0 %v94
    %673 = vmatpush.msra.mxu0 %v90
    %674 = vmatpush.msra.mxu0 %v86
    %675 = vmatpush.msra.mxu0 %v82
    %676 = vmatpush.msra.mxu0 %v78
    %677 = vmatpush.msra.mxu0 %v74
    %678 = vmatpush.msra.mxu0 %v70
    %679 = vmatpush.msra.mxu0 %v66
    %680 = vmatmul.f32.gmra.mxu0 %v601
    %v681 = vpop.f32.mrf.mxu0
    %v682 = vadd.f32 0.0, %v681
    %683 = vmatmul.f32.gmra.mxu0 %v602
    %v684 = vpop.f32.mrf.mxu0
    %v685 = vadd.f32 0.0, %v684
    %686 = vdwg.mxu0
    %687 = vmatpush.msra.mxu0 %v127
    %688 = vmatpush.msra.mxu0 %v123
    %689 = vmatpush.msra.mxu0 %v119
    %690 = vmatpush.msra.mxu0 %v115
    %691 = vmatpush.msra.mxu0 %v111
    %692 = vmatpush.msra.mxu0 %v107
    %693 = vmatpush.msra.mxu0 %v103
    %694 = vmatpush.msra.mxu0 %v99
    %695 = vmatpush.msra.mxu0 %v95
    %696 = vmatpush.msra.mxu0 %v91
    %697 = vmatpush.msra.mxu0 %v87
    %698 = vmatpush.msra.mxu0 %v83
    %699 = vmatpush.msra.mxu0 %v79
    %700 = vmatpush.msra.mxu0 %v75
    %701 = vmatpush.msra.mxu0 %v71
    %702 = vmatpush.msra.mxu0 %v67
    %703 = vmatmul.f32.gmra.mxu0 %v601
    %v704 = vpop.f32.mrf.mxu0
    %v705 = vadd.f32 0.0, %v704
    %706 = vmatmul.f32.gmra.mxu0 %v602
    %v707 = vpop.f32.mrf.mxu0
    %v708 = vadd.f32 0.0, %v707
    %709 = vdwg.mxu0
    %v710 = vadd.f32 %v610, %v636
    %v711 = vadd.f32 %v611, %v659
    %v712 = vadd.f32 %v612, %v682
    %v713 = vadd.f32 %v613, %v705
    %v714 = vadd.f32 %v614, %v639
    %v715 = vadd.f32 %v615, %v662
    %v716 = vadd.f32 %v616, %v685
    %v717 = vadd.f32 %v617, %v708
    %v718 = vxor.u32 %v710, 2147483648
    %v719 = vxor.u32 %v714, 2147483648
    %v720 = vmul.f32 %v718, 1.442695
    %v721 = vpow.pop %v720
    %v722 = vmul.f32 %v719, 1.442695
    %v723 = vpow.pop %v722
    %v724 = vadd.f32 %v721, 1.0
    %v725 = vadd.f32 %v723, 1.0
    %v726 = vrcp.pop %v724
    %v727 = vmul.f32 %v724, %v726
    %v728 = vsub.f32 1.0, %v727
    %v729 = vmul.f32 %v726, %v728
    %v730 = vadd.f32 %v726, %v729
    %vm731 = vweird.f32 %v724
    %vm732 = vweird.f32 %v726
    %vm733 = vmor %vm731, %vm732
    %v734 = vsel %vm733, %v726, %v730
    %v735 = vand.u32 2147483647, %v724
    %vm736 = vcmp.eq.f32.partialorder %v735, 8.507059e+37
    %v737 = vand.u32 %v724, 2147483648
    %v738 = vor.u32 1.1754944e-38, %v737
    %v739 = vsel %vm736, %v738, %v734
    %v740 = vmul.f32 1.0, %v739
    %v741 = vrcp.pop %v725
    %v742 = vmul.f32 %v725, %v741
    %v743 = vsub.f32 1.0, %v742
    %v744 = vmul.f32 %v741, %v743
    %v745 = vadd.f32 %v741, %v744
    %vm746 = vweird.f32 %v725
    %vm747 = vweird.f32 %v741
    %vm748 = vmor %vm746, %vm747
    %v749 = vsel %vm748, %v741, %v745
    %v750 = vand.u32 2147483647, %v725
    %vm751 = vcmp.eq.f32.partialorder %v750, 8.507059e+37
    %v752 = vand.u32 %v725, 2147483648
    %v753 = vor.u32 1.1754944e-38, %v752
    %v754 = vsel %vm751, %v753, %v749
    %v755 = vmul.f32 1.0, %v754
    %v756 = vxor.u32 %v711, 2147483648
    %v757 = vxor.u32 %v715, 2147483648
    %v758 = vmul.f32 %v756, 1.442695
    %v759 = vpow.pop %v758
    %v760 = vmul.f32 %v757, 1.442695
    %v761 = vpow.pop %v760
    %v762 = vadd.f32 %v759, 1.0
    %v763 = vadd.f32 %v761, 1.0
    %v764 = vrcp.pop %v762
    %v765 = vmul.f32 %v762, %v764
    %v766 = vsub.f32 1.0, %v765
    %v767 = vmul.f32 %v764, %v766
    %v768 = vadd.f32 %v764, %v767
    %vm769 = vweird.f32 %v762
    %vm770 = vweird.f32 %v764
    %vm771 = vmor %vm769, %vm770
    %v772 = vsel %vm771, %v764, %v768
    %v773 = vand.u32 2147483647, %v762
    %vm774 = vcmp.eq.f32.partialorder %v773, 8.507059e+37
    %v775 = vand.u32 %v762, 2147483648
    %v776 = vor.u32 1.1754944e-38, %v775
    %v777 = vsel %vm774, %v776, %v772
    %v778 = vmul.f32 1.0, %v777
    %v779 = vrcp.pop %v763
    %v780 = vmul.f32 %v763, %v779
    %v781 = vsub.f32 1.0, %v780
    %v782 = vmul.f32 %v779, %v781
    %v783 = vadd.f32 %v779, %v782
    %vm784 = vweird.f32 %v763
    %vm785 = vweird.f32 %v779
    %vm786 = vmor %vm784, %vm785
    %v787 = vsel %vm786, %v779, %v783
    %v788 = vand.u32 2147483647, %v763
    %vm789 = vcmp.eq.f32.partialorder %v788, 8.507059e+37
    %v790 = vand.u32 %v763, 2147483648
    %v791 = vor.u32 1.1754944e-38, %v790
    %v792 = vsel %vm789, %v791, %v787
    %v793 = vmul.f32 1.0, %v792
    %v794 = vtanh.pop %v712
    %v795 = vtanh.pop %v716
    %v796 = vxor.u32 %v713, 2147483648
    %v797 = vxor.u32 %v717, 2147483648
    %v798 = vmul.f32 %v796, 1.442695
    %v799 = vpow.pop %v798
    %v800 = vmul.f32 %v797, 1.442695
    %v801 = vpow.pop %v800
    %v802 = vadd.f32 %v799, 1.0
    %v803 = vadd.f32 %v801, 1.0
    %v804 = vrcp.pop %v802
    %v805 = vmul.f32 %v802, %v804
    %v806 = vsub.f32 1.0, %v805
    %v807 = vmul.f32 %v804, %v806
    %v808 = vadd.f32 %v804, %v807
    %vm809 = vweird.f32 %v802
    %vm810 = vweird.f32 %v804
    %vm811 = vmor %vm809, %vm810
    %v812 = vsel %vm811, %v804, %v808
    %v813 = vand.u32 2147483647, %v802
    %vm814 = vcmp.eq.f32.partialorder %v813, 8.507059e+37
    %v815 = vand.u32 %v802, 2147483648
    %v816 = vor.u32 1.1754944e-38, %v815
    %v817 = vsel %vm814, %v816, %v812
    %v818 = vmul.f32 1.0, %v817
    %v819 = vrcp.pop %v803
    %v820 = vmul.f32 %v803, %v819
    %v821 = vsub.f32 1.0, %v820
    %v822 = vmul.f32 %v819, %v821
    %v823 = vadd.f32 %v819, %v822
    %vm824 = vweird.f32 %v803
    %vm825 = vweird.f32 %v819
    %vm826 = vmor %vm824, %vm825
    %v827 = vsel %vm826, %v819, %v823
    %v828 = vand.u32 2147483647, %v803
    %vm829 = vcmp.eq.f32.partialorder %v828, 8.507059e+37
    %v830 = vand.u32 %v803, 2147483648
    %v831 = vor.u32 1.1754944e-38, %v830
    %v832 = vsel %vm829, %v831, %v827
    %v833 = vmul.f32 1.0, %v832
    %v834 = vmul.f32 %v778, %v597
    %v835 = vmul.f32 %v793, %v598
    %v836 = vmul.f32 %v740, %v794
    %v837 = vmul.f32 %v755, %v795
    %v838 = vadd.f32 %v834, %v836
    %v839 = vadd.f32 %v835, %v837
    %v840 = vtanh.pop %v838
    %v841 = vtanh.pop %v839
    %v842 = vmul.f32 %v818, %v840
    %v843 = vmul.f32 %v833, %v841
    %v844 = vld [vmem:[#allocation7 + $0x2] sm:$0x1]
    %v845 = vperm.slane %v844, 0
    %v846 = vmul.f32 %v842, %v845
    %v847 = vmul.f32 %v843, %v845
    %v848 = vadd.f32 %v607, %v846
    %v849 = vadd.f32 %v608, %v847
    %s850 = scalar_lea.vmem [#allocation3], 192
    %v851 = vld [vmem:[%s850] sm:$0xff]
    %v852 = vld [vmem:[%s850 + $0x8] sm:$0xff]
    %v853 = vld [vmem:[%s850 + $0x10] sm:$0xff]
    %v854 = vld [vmem:[%s850 + $0x18] sm:$0xff]
    %v855 = vld [vmem:[%s850 + $0x20] sm:$0xff]
    %v856 = vld [vmem:[%s850 + $0x28] sm:$0xff]
    %v857 = vld [vmem:[%s850 + $0x30] sm:$0xff]
    %v858 = vld [vmem:[%s850 + $0x38] sm:$0xff]
    %859 = vmatpush.msra.mxu0 %v124
    %860 = vmatpush.msra.mxu0 %v120
    %861 = vmatpush.msra.mxu0 %v116
    %862 = vmatpush.msra.mxu0 %v112
    %863 = vmatpush.msra.mxu0 %v108
    %864 = vmatpush.msra.mxu0 %v104
    %865 = vmatpush.msra.mxu0 %v100
    %866 = vmatpush.msra.mxu0 %v96
    %867 = vmatpush.msra.mxu0 %v92
    %868 = vmatpush.msra.mxu0 %v88
    %869 = vmatpush.msra.mxu0 %v84
    %870 = vmatpush.msra.mxu0 %v80
    %871 = vmatpush.msra.mxu0 %v76
    %872 = vmatpush.msra.mxu0 %v72
    %873 = vmatpush.msra.mxu0 %v68
    %874 = vmatpush.msra.mxu0 %v64
    %875 = vmatmul.f32.gmra.mxu0 %v842
    %v876 = vpop.f32.mrf.mxu0
    %v877 = vadd.f32 0.0, %v876
    %878 = vmatmul.f32.gmra.mxu0 %v843
    %v879 = vpop.f32.mrf.mxu0
    %v880 = vadd.f32 0.0, %v879
    %881 = vdwg.mxu0
    %882 = vmatpush.msra.mxu0 %v125
    %883 = vmatpush.msra.mxu0 %v121
    %884 = vmatpush.msra.mxu0 %v117
    %885 = vmatpush.msra.mxu0 %v113
    %886 = vmatpush.msra.mxu0 %v109
    %887 = vmatpush.msra.mxu0 %v105
    %888 = vmatpush.msra.mxu0 %v101
    %889 = vmatpush.msra.mxu0 %v97
    %890 = vmatpush.msra.mxu0 %v93
    %891 = vmatpush.msra.mxu0 %v89
    %892 = vmatpush.msra.mxu0 %v85
    %893 = vmatpush.msra.mxu0 %v81
    %894 = vmatpush.msra.mxu0 %v77
    %895 = vmatpush.msra.mxu0 %v73
    %896 = vmatpush.msra.mxu0 %v69
    %897 = vmatpush.msra.mxu0 %v65
    %898 = vmatmul.f32.gmra.mxu0 %v842
    %v899 = vpop.f32.mrf.mxu0
    %v900 = vadd.f32 0.0, %v899
    %901 = vmatmul.f32.gmra.mxu0 %v843
    %v902 = vpop.f32.mrf.mxu0
    %v903 = vadd.f32 0.0, %v902
    %904 = vdwg.mxu0
    %905 = vmatpush.msra.mxu0 %v126
    %906 = vmatpush.msra.mxu0 %v122
    %907 = vmatpush.msra.mxu0 %v118
    %908 = vmatpush.msra.mxu0 %v114
    %909 = vmatpush.msra.mxu0 %v110
    %910 = vmatpush.msra.mxu0 %v106
    %911 = vmatpush.msra.mxu0 %v102
    %912 = vmatpush.msra.mxu0 %v98
    %913 = vmatpush.msra.mxu0 %v94
    %914 = vmatpush.msra.mxu0 %v90
    %915 = vmatpush.msra.mxu0 %v86
    %916 = vmatpush.msra.mxu0 %v82
    %917 = vmatpush.msra.mxu0 %v78
    %918 = vmatpush.msra.mxu0 %v74
    %919 = vmatpush.msra.mxu0 %v70
    %920 = vmatpush.msra.mxu0 %v66
    %921 = vmatmul.f32.gmra.mxu0 %v842
    %v922 = vpop.f32.mrf.mxu0
    %v923 = vadd.f32 0.0, %v922
    %924 = vmatmul.f32.gmra.mxu0 %v843
    %v925 = vpop.f32.mrf.mxu0
    %v926 = vadd.f32 0.0, %v925
    %927 = vdwg.mxu0
    %928 = vmatpush.msra.mxu0 %v127
    %929 = vmatpush.msra.mxu0 %v123
    %930 = vmatpush.msra.mxu0 %v119
    %931 = vmatpush.msra.mxu0 %v115
    %932 = vmatpush.msra.mxu0 %v111
    %933 = vmatpush.msra.mxu0 %v107
    %934 = vmatpush.msra.mxu0 %v103
    %935 = vmatpush.msra.mxu0 %v99
    %936 = vmatpush.msra.mxu0 %v95
    %937 = vmatpush.msra.mxu0 %v91
    %938 = vmatpush.msra.mxu0 %v87
    %939 = vmatpush.msra.mxu0 %v83
    %940 = vmatpush.msra.mxu0 %v79
    %941 = vmatpush.msra.mxu0 %v75
    %942 = vmatpush.msra.mxu0 %v71
    %943 = vmatpush.msra.mxu0 %v67
    %944 = vmatmul.f32.gmra.mxu0 %v842
    %v945 = vpop.f32.mrf.mxu0
    %v946 = vadd.f32 0.0, %v945
    %947 = vmatmul.f32.gmra.mxu0 %v843
    %v948 = vpop.f32.mrf.mxu0
    %v949 = vadd.f32 0.0, %v948
    %950 = vdwg.mxu0
    %v951 = vadd.f32 %v851, %v877
    %v952 = vadd.f32 %v852, %v900
    %v953 = vadd.f32 %v853, %v923
    %v954 = vadd.f32 %v854, %v946
    %v955 = vadd.f32 %v855, %v880
    %v956 = vadd.f32 %v856, %v903
    %v957 = vadd.f32 %v857, %v926
    %v958 = vadd.f32 %v858, %v949
    %v959 = vxor.u32 %v951, 2147483648
    %v960 = vxor.u32 %v955, 2147483648
    %v961 = vmul.f32 %v959, 1.442695
    %v962 = vpow.pop %v961
    %v963 = vmul.f32 %v960, 1.442695
    %v964 = vpow.pop %v963
    %v965 = vadd.f32 %v962, 1.0
    %v966 = vadd.f32 %v964, 1.0
    %v967 = vrcp.pop %v965
    %v968 = vmul.f32 %v965, %v967
    %v969 = vsub.f32 1.0, %v968
    %v970 = vmul.f32 %v967, %v969
    %v971 = vadd.f32 %v967, %v970
    %vm972 = vweird.f32 %v965
    %vm973 = vweird.f32 %v967
    %vm974 = vmor %vm972, %vm973
    %v975 = vsel %vm974, %v967, %v971
    %v976 = vand.u32 2147483647, %v965
    %vm977 = vcmp.eq.f32.partialorder %v976, 8.507059e+37
    %v978 = vand.u32 %v965, 2147483648
    %v979 = vor.u32 1.1754944e-38, %v978
    %v980 = vsel %vm977, %v979, %v975
    %v981 = vmul.f32 1.0, %v980
    %v982 = vrcp.pop %v966
    %v983 = vmul.f32 %v966, %v982
    %v984 = vsub.f32 1.0, %v983
    %v985 = vmul.f32 %v982, %v984
    %v986 = vadd.f32 %v982, %v985
    %vm987 = vweird.f32 %v966
    %vm988 = vweird.f32 %v982
    %vm989 = vmor %vm987, %vm988
    %v990 = vsel %vm989, %v982, %v986
    %v991 = vand.u32 2147483647, %v966
    %vm992 = vcmp.eq.f32.partialorder %v991, 8.507059e+37
    %v993 = vand.u32 %v966, 2147483648
    %v994 = vor.u32 1.1754944e-38, %v993
    %v995 = vsel %vm992, %v994, %v990
    %v996 = vmul.f32 1.0, %v995
    %v997 = vxor.u32 %v952, 2147483648
    %v998 = vxor.u32 %v956, 2147483648
    %v999 = vmul.f32 %v997, 1.442695
    %v1000 = vpow.pop %v999
    %v1001 = vmul.f32 %v998, 1.442695
    %v1002 = vpow.pop %v1001
    %v1003 = vadd.f32 %v1000, 1.0
    %v1004 = vadd.f32 %v1002, 1.0
    %v1005 = vrcp.pop %v1003
    %v1006 = vmul.f32 %v1003, %v1005
    %v1007 = vsub.f32 1.0, %v1006
    %v1008 = vmul.f32 %v1005, %v1007
    %v1009 = vadd.f32 %v1005, %v1008
    %vm1010 = vweird.f32 %v1003
    %vm1011 = vweird.f32 %v1005
    %vm1012 = vmor %vm1010, %vm1011
    %v1013 = vsel %vm1012, %v1005, %v1009
    %v1014 = vand.u32 2147483647, %v1003
    %vm1015 = vcmp.eq.f32.partialorder %v1014, 8.507059e+37
    %v1016 = vand.u32 %v1003, 2147483648
    %v1017 = vor.u32 1.1754944e-38, %v1016
    %v1018 = vsel %vm1015, %v1017, %v1013
    %v1019 = vmul.f32 1.0, %v1018
    %v1020 = vrcp.pop %v1004
    %v1021 = vmul.f32 %v1004, %v1020
    %v1022 = vsub.f32 1.0, %v1021
    %v1023 = vmul.f32 %v1020, %v1022
    %v1024 = vadd.f32 %v1020, %v1023
    %vm1025 = vweird.f32 %v1004
    %vm1026 = vweird.f32 %v1020
    %vm1027 = vmor %vm1025, %vm1026
    %v1028 = vsel %vm1027, %v1020, %v1024
    %v1029 = vand.u32 2147483647, %v1004
    %vm1030 = vcmp.eq.f32.partialorder %v1029, 8.507059e+37
    %v1031 = vand.u32 %v1004, 2147483648
    %v1032 = vor.u32 1.1754944e-38, %v1031
    %v1033 = vsel %vm1030, %v1032, %v1028
    %v1034 = vmul.f32 1.0, %v1033
    %v1035 = vtanh.pop %v953
    %v1036 = vtanh.pop %v957
    %v1037 = vxor.u32 %v954, 2147483648
    %v1038 = vxor.u32 %v958, 2147483648
    %v1039 = vmul.f32 %v1037, 1.442695
    %v1040 = vpow.pop %v1039
    %v1041 = vmul.f32 %v1038, 1.442695
    %v1042 = vpow.pop %v1041
    %v1043 = vadd.f32 %v1040, 1.0
    %v1044 = vadd.f32 %v1042, 1.0
    %v1045 = vrcp.pop %v1043
    %v1046 = vmul.f32 %v1043, %v1045
    %v1047 = vsub.f32 1.0, %v1046
    %v1048 = vmul.f32 %v1045, %v1047
    %v1049 = vadd.f32 %v1045, %v1048
    %vm1050 = vweird.f32 %v1043
    %vm1051 = vweird.f32 %v1045
    %vm1052 = vmor %vm1050, %vm1051
    %v1053 = vsel %vm1052, %v1045, %v1049
    %v1054 = vand.u32 2147483647, %v1043
    %vm1055 = vcmp.eq.f32.partialorder %v1054, 8.507059e+37
    %v1056 = vand.u32 %v1043, 2147483648
    %v1057 = vor.u32 1.1754944e-38, %v1056
    %v1058 = vsel %vm1055, %v1057, %v1053
    %v1059 = vmul.f32 1.0, %v1058
    %v1060 = vrcp.pop %v1044
    %v1061 = vmul.f32 %v1044, %v1060
    %v1062 = vsub.f32 1.0, %v1061
    %v1063 = vmul.f32 %v1060, %v1062
    %v1064 = vadd.f32 %v1060, %v1063
    %vm1065 = vweird.f32 %v1044
    %vm1066 = vweird.f32 %v1060
    %vm1067 = vmor %vm1065, %vm1066
    %v1068 = vsel %vm1067, %v1060, %v1064
    %v1069 = vand.u32 2147483647, %v1044
    %vm1070 = vcmp.eq.f32.partialorder %v1069, 8.507059e+37
    %v1071 = vand.u32 %v1044, 2147483648
    %v1072 = vor.u32 1.1754944e-38, %v1071
    %v1073 = vsel %vm1070, %v1072, %v1068
    %v1074 = vmul.f32 1.0, %v1073
    %v1075 = vmul.f32 %v1019, %v838
    %v1076 = vmul.f32 %v1034, %v839
    %v1077 = vmul.f32 %v981, %v1035
    %v1078 = vmul.f32 %v996, %v1036
    %v1079 = vadd.f32 %v1075, %v1077
    %v1080 = vadd.f32 %v1076, %v1078
    %v1081 = vtanh.pop %v1079
    %v1082 = vtanh.pop %v1080
    %v1083 = vmul.f32 %v1059, %v1081
    %v1084 = vmul.f32 %v1074, %v1082
    %v1085 = vld [vmem:[#allocation7 + $0x3] sm:$0x1]
    %v1086 = vperm.slane %v1085, 0
    %v1087 = vmul.f32 %v1083, %v1086
    %v1088 = vmul.f32 %v1084, %v1086
    %v1089 = vadd.f32 %v848, %v1087
    %v1090 = vadd.f32 %v849, %v1088
    %s1091 = scalar_lea.vmem [#allocation3], 256
    %v1092 = vld [vmem:[%s1091] sm:$0xff]
    %v1093 = vld [vmem:[%s1091 + $0x8] sm:$0xff]
    %v1094 = vld [vmem:[%s1091 + $0x10] sm:$0xff]
    %v1095 = vld [vmem:[%s1091 + $0x18] sm:$0xff]
    %v1096 = vld [vmem:[%s1091 + $0x20] sm:$0xff]
    %v1097 = vld [vmem:[%s1091 + $0x28] sm:$0xff]
    %v1098 = vld [vmem:[%s1091 + $0x30] sm:$0xff]
    %v1099 = vld [vmem:[%s1091 + $0x38] sm:$0xff]
    %1100 = vmatpush.msra.mxu0 %v124
    %1101 = vmatpush.msra.mxu0 %v120
    %1102 = vmatpush.msra.mxu0 %v116
    %1103 = vmatpush.msra.mxu0 %v112
    %1104 = vmatpush.msra.mxu0 %v108
    %1105 = vmatpush.msra.mxu0 %v104
    %1106 = vmatpush.msra.mxu0 %v100
    %1107 = vmatpush.msra.mxu0 %v96
    %1108 = vmatpush.msra.mxu0 %v92
    %1109 = vmatpush.msra.mxu0 %v88
    %1110 = vmatpush.msra.mxu0 %v84
    %1111 = vmatpush.msra.mxu0 %v80
    %1112 = vmatpush.msra.mxu0 %v76
    %1113 = vmatpush.msra.mxu0 %v72
    %1114 = vmatpush.msra.mxu0 %v68
    %1115 = vmatpush.msra.mxu0 %v64
    %1116 = vmatmul.f32.gmra.mxu0 %v1083
    %v1117 = vpop.f32.mrf.mxu0
    %v1118 = vadd.f32 0.0, %v1117
    %1119 = vmatmul.f32.gmra.mxu0 %v1084
    %v1120 = vpop.f32.mrf.mxu0
    %v1121 = vadd.f32 0.0, %v1120
    %1122 = vdwg.mxu0
    %1123 = vmatpush.msra.mxu0 %v125
    %1124 = vmatpush.msra.mxu0 %v121
    %1125 = vmatpush.msra.mxu0 %v117
    %1126 = vmatpush.msra.mxu0 %v113
    %1127 = vmatpush.msra.mxu0 %v109
    %1128 = vmatpush.msra.mxu0 %v105
    %1129 = vmatpush.msra.mxu0 %v101
    %1130 = vmatpush.msra.mxu0 %v97
    %1131 = vmatpush.msra.mxu0 %v93
    %1132 = vmatpush.msra.mxu0 %v89
    %1133 = vmatpush.msra.mxu0 %v85
    %1134 = vmatpush.msra.mxu0 %v81
    %1135 = vmatpush.msra.mxu0 %v77
    %1136 = vmatpush.msra.mxu0 %v73
    %1137 = vmatpush.msra.mxu0 %v69
    %1138 = vmatpush.msra.mxu0 %v65
    %1139 = vmatmul.f32.gmra.mxu0 %v1083
    %v1140 = vpop.f32.mrf.mxu0
    %v1141 = vadd.f32 0.0, %v1140
    %1142 = vmatmul.f32.gmra.mxu0 %v1084
    %v1143 = vpop.f32.mrf.mxu0
    %v1144 = vadd.f32 0.0, %v1143
    %1145 = vdwg.mxu0
    %1146 = vmatpush.msra.mxu0 %v126
    %1147 = vmatpush.msra.mxu0 %v122
    %1148 = vmatpush.msra.mxu0 %v118
    %1149 = vmatpush.msra.mxu0 %v114
    %1150 = vmatpush.msra.mxu0 %v110
    %1151 = vmatpush.msra.mxu0 %v106
    %1152 = vmatpush.msra.mxu0 %v102
    %1153 = vmatpush.msra.mxu0 %v98
    %1154 = vmatpush.msra.mxu0 %v94
    %1155 = vmatpush.msra.mxu0 %v90
    %1156 = vmatpush.msra.mxu0 %v86
    %1157 = vmatpush.msra.mxu0 %v82
    %1158 = vmatpush.msra.mxu0 %v78
    %1159 = vmatpush.msra.mxu0 %v74
    %1160 = vmatpush.msra.mxu0 %v70
    %1161 = vmatpush.msra.mxu0 %v66
    %1162 = vmatmul.f32.gmra.mxu0 %v1083
    %v1163 = vpop.f32.mrf.mxu0
    %v1164 = vadd.f32 0.0, %v1163
    %1165 = vmatmul.f32.gmra.mxu0 %v1084
    %v1166 = vpop.f32.mrf.mxu0
    %v1167 = vadd.f32 0.0, %v1166
    %1168 = vdwg.mxu0
    %1169 = vmatpush.msra.mxu0 %v127
    %1170 = vmatpush.msra.mxu0 %v123
    %1171 = vmatpush.msra.mxu0 %v119
    %1172 = vmatpush.msra.mxu0 %v115
    %1173 = vmatpush.msra.mxu0 %v111
    %1174 = vmatpush.msra.mxu0 %v107
    %1175 = vmatpush.msra.mxu0 %v103
    %1176 = vmatpush.msra.mxu0 %v99
    %1177 = vmatpush.msra.mxu0 %v95
    %1178 = vmatpush.msra.mxu0 %v91
    %1179 = vmatpush.msra.mxu0 %v87
    %1180 = vmatpush.msra.mxu0 %v83
    %1181 = vmatpush.msra.mxu0 %v79
    %1182 = vmatpush.msra.mxu0 %v75
    %1183 = vmatpush.msra.mxu0 %v71
    %1184 = vmatpush.msra.mxu0 %v67
    %1185 = vmatmul.f32.gmra.mxu0 %v1083
    %v1186 = vpop.f32.mrf.mxu0
    %v1187 = vadd.f32 0.0, %v1186
    %1188 = vmatmul.f32.gmra.mxu0 %v1084
    %v1189 = vpop.f32.mrf.mxu0
    %v1190 = vadd.f32 0.0, %v1189
    %1191 = vdwg.mxu0
    %v1192 = vadd.f32 %v1092, %v1118
    %v1193 = vadd.f32 %v1093, %v1141
    %v1194 = vadd.f32 %v1094, %v1164
    %v1195 = vadd.f32 %v1095, %v1187
    %v1196 = vadd.f32 %v1096, %v1121
    %v1197 = vadd.f32 %v1097, %v1144
    %v1198 = vadd.f32 %v1098, %v1167
    %v1199 = vadd.f32 %v1099, %v1190
    %v1200 = vxor.u32 %v1192, 2147483648
    %v1201 = vxor.u32 %v1196, 2147483648
    %v1202 = vmul.f32 %v1200, 1.442695
    %v1203 = vpow.pop %v1202
    %v1204 = vmul.f32 %v1201, 1.442695
    %v1205 = vpow.pop %v1204
    %v1206 = vadd.f32 %v1203, 1.0
    %v1207 = vadd.f32 %v1205, 1.0
    %v1208 = vrcp.pop %v1206
    %v1209 = vmul.f32 %v1206, %v1208
    %v1210 = vsub.f32 1.0, %v1209
    %v1211 = vmul.f32 %v1208, %v1210
    %v1212 = vadd.f32 %v1208, %v1211
    %vm1213 = vweird.f32 %v1206
    %vm1214 = vweird.f32 %v1208
    %vm1215 = vmor %vm1213, %vm1214
    %v1216 = vsel %vm1215, %v1208, %v1212
    %v1217 = vand.u32 2147483647, %v1206
    %vm1218 = vcmp.eq.f32.partialorder %v1217, 8.507059e+37
    %v1219 = vand.u32 %v1206, 2147483648
    %v1220 = vor.u32 1.1754944e-38, %v1219
    %v1221 = vsel %vm1218, %v1220, %v1216
    %v1222 = vmul.f32 1.0, %v1221
    %v1223 = vrcp.pop %v1207
    %v1224 = vmul.f32 %v1207, %v1223
    %v1225 = vsub.f32 1.0, %v1224
    %v1226 = vmul.f32 %v1223, %v1225
    %v1227 = vadd.f32 %v1223, %v1226
    %vm1228 = vweird.f32 %v1207
    %vm1229 = vweird.f32 %v1223
    %vm1230 = vmor %vm1228, %vm1229
    %v1231 = vsel %vm1230, %v1223, %v1227
    %v1232 = vand.u32 2147483647, %v1207
    %vm1233 = vcmp.eq.f32.partialorder %v1232, 8.507059e+37
    %v1234 = vand.u32 %v1207, 2147483648
    %v1235 = vor.u32 1.1754944e-38, %v1234
    %v1236 = vsel %vm1233, %v1235, %v1231
    %v1237 = vmul.f32 1.0, %v1236
    %v1238 = vxor.u32 %v1193, 2147483648
    %v1239 = vxor.u32 %v1197, 2147483648
    %v1240 = vmul.f32 %v1238, 1.442695
    %v1241 = vpow.pop %v1240
    %v1242 = vmul.f32 %v1239, 1.442695
    %v1243 = vpow.pop %v1242
    %v1244 = vadd.f32 %v1241, 1.0
    %v1245 = vadd.f32 %v1243, 1.0
    %v1246 = vrcp.pop %v1244
    %v1247 = vmul.f32 %v1244, %v1246
    %v1248 = vsub.f32 1.0, %v1247
    %v1249 = vmul.f32 %v1246, %v1248
    %v1250 = vadd.f32 %v1246, %v1249
    %vm1251 = vweird.f32 %v1244
    %vm1252 = vweird.f32 %v1246
    %vm1253 = vmor %vm1251, %vm1252
    %v1254 = vsel %vm1253, %v1246, %v1250
    %v1255 = vand.u32 2147483647, %v1244
    %vm1256 = vcmp.eq.f32.partialorder %v1255, 8.507059e+37
    %v1257 = vand.u32 %v1244, 2147483648
    %v1258 = vor.u32 1.1754944e-38, %v1257
    %v1259 = vsel %vm1256, %v1258, %v1254
    %v1260 = vmul.f32 1.0, %v1259
    %v1261 = vrcp.pop %v1245
    %v1262 = vmul.f32 %v1245, %v1261
    %v1263 = vsub.f32 1.0, %v1262
    %v1264 = vmul.f32 %v1261, %v1263
    %v1265 = vadd.f32 %v1261, %v1264
    %vm1266 = vweird.f32 %v1245
    %vm1267 = vweird.f32 %v1261
    %vm1268 = vmor %vm1266, %vm1267
    %v1269 = vsel %vm1268, %v1261, %v1265
    %v1270 = vand.u32 2147483647, %v1245
    %vm1271 = vcmp.eq.f32.partialorder %v1270, 8.507059e+37
    %v1272 = vand.u32 %v1245, 2147483648
    %v1273 = vor.u32 1.1754944e-38, %v1272
    %v1274 = vsel %vm1271, %v1273, %v1269
    %v1275 = vmul.f32 1.0, %v1274
    %v1276 = vtanh.pop %v1194
    %v1277 = vtanh.pop %v1198
    %v1278 = vxor.u32 %v1195, 2147483648
    %v1279 = vxor.u32 %v1199, 2147483648
    %v1280 = vmul.f32 %v1278, 1.442695
    %v1281 = vpow.pop %v1280
    %v1282 = vmul.f32 %v1279, 1.442695
    %v1283 = vpow.pop %v1282
    %v1284 = vadd.f32 %v1281, 1.0
    %v1285 = vadd.f32 %v1283, 1.0
    %v1286 = vrcp.pop %v1284
    %v1287 = vmul.f32 %v1284, %v1286
    %v1288 = vsub.f32 1.0, %v1287
    %v1289 = vmul.f32 %v1286, %v1288
    %v1290 = vadd.f32 %v1286, %v1289
    %vm1291 = vweird.f32 %v1284
    %vm1292 = vweird.f32 %v1286
    %vm1293 = vmor %vm1291, %vm1292
    %v1294 = vsel %vm1293, %v1286, %v1290
    %v1295 = vand.u32 2147483647, %v1284
    %vm1296 = vcmp.eq.f32.partialorder %v1295, 8.507059e+37
    %v1297 = vand.u32 %v1284, 2147483648
    %v1298 = vor.u32 1.1754944e-38, %v1297
    %v1299 = vsel %vm1296, %v1298, %v1294
    %v1300 = vmul.f32 1.0, %v1299
    %v1301 = vrcp.pop %v1285
    %v1302 = vmul.f32 %v1285, %v1301
    %v1303 = vsub.f32 1.0, %v1302
    %v1304 = vmul.f32 %v1301, %v1303
    %v1305 = vadd.f32 %v1301, %v1304
    %vm1306 = vweird.f32 %v1285
    %vm1307 = vweird.f32 %v1301
    %vm1308 = vmor %vm1306, %vm1307
    %v1309 = vsel %vm1308, %v1301, %v1305
    %v1310 = vand.u32 2147483647, %v1285
    %vm1311 = vcmp.eq.f32.partialorder %v1310, 8.507059e+37
    %v1312 = vand.u32 %v1285, 2147483648
    %v1313 = vor.u32 1.1754944e-38, %v1312
    %v1314 = vsel %vm1311, %v1313, %v1309
    %v1315 = vmul.f32 1.0, %v1314
    %v1316 = vmul.f32 %v1260, %v1079
    %v1317 = vmul.f32 %v1275, %v1080
    %v1318 = vmul.f32 %v1222, %v1276
    %v1319 = vmul.f32 %v1237, %v1277
    %v1320 = vadd.f32 %v1316, %v1318
    %v1321 = vadd.f32 %v1317, %v1319
    %v1322 = vtanh.pop %v1320
    %v1323 = vtanh.pop %v1321
    %v1324 = vmul.f32 %v1300, %v1322
    %v1325 = vmul.f32 %v1315, %v1323
    %v1326 = vld [vmem:[#allocation7 + $0x4] sm:$0x1]
    %v1327 = vperm.slane %v1326, 0
    %v1328 = vmul.f32 %v1324, %v1327
    %v1329 = vmul.f32 %v1325, %v1327
    %v1330 = vadd.f32 %v1089, %v1328
    %v1331 = vadd.f32 %v1090, %v1329
    %s1332 = scalar_lea.vmem [#allocation3], 320
    %v1333 = vld [vmem:[%s1332] sm:$0xff]
    %v1334 = vld [vmem:[%s1332 + $0x8] sm:$0xff]
    %v1335 = vld [vmem:[%s1332 + $0x10] sm:$0xff]
    %v1336 = vld [vmem:[%s1332 + $0x18] sm:$0xff]
    %v1337 = vld [vmem:[%s1332 + $0x20] sm:$0xff]
    %v1338 = vld [vmem:[%s1332 + $0x28] sm:$0xff]
    %v1339 = vld [vmem:[%s1332 + $0x30] sm:$0xff]
    %v1340 = vld [vmem:[%s1332 + $0x38] sm:$0xff]
    %1341 = vmatpush.msra.mxu0 %v124
    %1342 = vmatpush.msra.mxu0 %v120
    %1343 = vmatpush.msra.mxu0 %v116
    %1344 = vmatpush.msra.mxu0 %v112
    %1345 = vmatpush.msra.mxu0 %v108
    %1346 = vmatpush.msra.mxu0 %v104
    %1347 = vmatpush.msra.mxu0 %v100
    %1348 = vmatpush.msra.mxu0 %v96
    %1349 = vmatpush.msra.mxu0 %v92
    %1350 = vmatpush.msra.mxu0 %v88
    %1351 = vmatpush.msra.mxu0 %v84
    %1352 = vmatpush.msra.mxu0 %v80
    %1353 = vmatpush.msra.mxu0 %v76
    %1354 = vmatpush.msra.mxu0 %v72
    %1355 = vmatpush.msra.mxu0 %v68
    %1356 = vmatpush.msra.mxu0 %v64
    %1357 = vmatmul.f32.gmra.mxu0 %v1324
    %v1358 = vpop.f32.mrf.mxu0
    %v1359 = vadd.f32 0.0, %v1358
    %1360 = vmatmul.f32.gmra.mxu0 %v1325
    %v1361 = vpop.f32.mrf.mxu0
    %v1362 = vadd.f32 0.0, %v1361
    %1363 = vdwg.mxu0
    %1364 = vmatpush.msra.mxu0 %v125
    %1365 = vmatpush.msra.mxu0 %v121
    %1366 = vmatpush.msra.mxu0 %v117
    %1367 = vmatpush.msra.mxu0 %v113
    %1368 = vmatpush.msra.mxu0 %v109
    %1369 = vmatpush.msra.mxu0 %v105
    %1370 = vmatpush.msra.mxu0 %v101
    %1371 = vmatpush.msra.mxu0 %v97
    %1372 = vmatpush.msra.mxu0 %v93
    %1373 = vmatpush.msra.mxu0 %v89
    %1374 = vmatpush.msra.mxu0 %v85
    %1375 = vmatpush.msra.mxu0 %v81
    %1376 = vmatpush.msra.mxu0 %v77
    %1377 = vmatpush.msra.mxu0 %v73
    %1378 = vmatpush.msra.mxu0 %v69
    %1379 = vmatpush.msra.mxu0 %v65
    %1380 = vmatmul.f32.gmra.mxu0 %v1324
    %v1381 = vpop.f32.mrf.mxu0
    %v1382 = vadd.f32 0.0, %v1381
    %1383 = vmatmul.f32.gmra.mxu0 %v1325
    %v1384 = vpop.f32.mrf.mxu0
    %v1385 = vadd.f32 0.0, %v1384
    %1386 = vdwg.mxu0
    %1387 = vmatpush.msra.mxu0 %v126
    %1388 = vmatpush.msra.mxu0 %v122
    %1389 = vmatpush.msra.mxu0 %v118
    %1390 = vmatpush.msra.mxu0 %v114
    %1391 = vmatpush.msra.mxu0 %v110
    %1392 = vmatpush.msra.mxu0 %v106
    %1393 = vmatpush.msra.mxu0 %v102
    %1394 = vmatpush.msra.mxu0 %v98
    %1395 = vmatpush.msra.mxu0 %v94
    %1396 = vmatpush.msra.mxu0 %v90
    %1397 = vmatpush.msra.mxu0 %v86
    %1398 = vmatpush.msra.mxu0 %v82
    %1399 = vmatpush.msra.mxu0 %v78
    %1400 = vmatpush.msra.mxu0 %v74
    %1401 = vmatpush.msra.mxu0 %v70
    %1402 = vmatpush.msra.mxu0 %v66
    %1403 = vmatmul.f32.gmra.mxu0 %v1324
    %v1404 = vpop.f32.mrf.mxu0
    %v1405 = vadd.f32 0.0, %v1404
    %1406 = vmatmul.f32.gmra.mxu0 %v1325
    %v1407 = vpop.f32.mrf.mxu0
    %v1408 = vadd.f32 0.0, %v1407
    %1409 = vdwg.mxu0
    %1410 = vmatpush.msra.mxu0 %v127
    %1411 = vmatpush.msra.mxu0 %v123
    %1412 = vmatpush.msra.mxu0 %v119
    %1413 = vmatpush.msra.mxu0 %v115
    %1414 = vmatpush.msra.mxu0 %v111
    %1415 = vmatpush.msra.mxu0 %v107
    %1416 = vmatpush.msra.mxu0 %v103
    %1417 = vmatpush.msra.mxu0 %v99
    %1418 = vmatpush.msra.mxu0 %v95
    %1419 = vmatpush.msra.mxu0 %v91
    %1420 = vmatpush.msra.mxu0 %v87
    %1421 = vmatpush.msra.mxu0 %v83
    %1422 = vmatpush.msra.mxu0 %v79
    %1423 = vmatpush.msra.mxu0 %v75
    %1424 = vmatpush.msra.mxu0 %v71
    %1425 = vmatpush.msra.mxu0 %v67
    %1426 = vmatmul.f32.gmra.mxu0 %v1324
    %v1427 = vpop.f32.mrf.mxu0
    %v1428 = vadd.f32 0.0, %v1427
    %1429 = vmatmul.f32.gmra.mxu0 %v1325
    %v1430 = vpop.f32.mrf.mxu0
    %v1431 = vadd.f32 0.0, %v1430
    %1432 = vdwg.mxu0
    %v1433 = vadd.f32 %v1333, %v1359
    %v1434 = vadd.f32 %v1334, %v1382
    %v1435 = vadd.f32 %v1335, %v1405
    %v1436 = vadd.f32 %v1336, %v1428
    %v1437 = vadd.f32 %v1337, %v1362
    %v1438 = vadd.f32 %v1338, %v1385
    %v1439 = vadd.f32 %v1339, %v1408
    %v1440 = vadd.f32 %v1340, %v1431
    %v1441 = vxor.u32 %v1433, 2147483648
    %v1442 = vxor.u32 %v1437, 2147483648
    %v1443 = vmul.f32 %v1441, 1.442695
    %v1444 = vpow.pop %v1443
    %v1445 = vmul.f32 %v1442, 1.442695
    %v1446 = vpow.pop %v1445
    %v1447 = vadd.f32 %v1444, 1.0
    %v1448 = vadd.f32 %v1446, 1.0
    %v1449 = vrcp.pop %v1447
    %v1450 = vmul.f32 %v1447, %v1449
    %v1451 = vsub.f32 1.0, %v1450
    %v1452 = vmul.f32 %v1449, %v1451
    %v1453 = vadd.f32 %v1449, %v1452
    %vm1454 = vweird.f32 %v1447
    %vm1455 = vweird.f32 %v1449
    %vm1456 = vmor %vm1454, %vm1455
    %v1457 = vsel %vm1456, %v1449, %v1453
    %v1458 = vand.u32 2147483647, %v1447
    %vm1459 = vcmp.eq.f32.partialorder %v1458, 8.507059e+37
    %v1460 = vand.u32 %v1447, 2147483648
    %v1461 = vor.u32 1.1754944e-38, %v1460
    %v1462 = vsel %vm1459, %v1461, %v1457
    %v1463 = vmul.f32 1.0, %v1462
    %v1464 = vrcp.pop %v1448
    %v1465 = vmul.f32 %v1448, %v1464
    %v1466 = vsub.f32 1.0, %v1465
    %v1467 = vmul.f32 %v1464, %v1466
    %v1468 = vadd.f32 %v1464, %v1467
    %vm1469 = vweird.f32 %v1448
    %vm1470 = vweird.f32 %v1464
    %vm1471 = vmor %vm1469, %vm1470
    %v1472 = vsel %vm1471, %v1464, %v1468
    %v1473 = vand.u32 2147483647, %v1448
    %vm1474 = vcmp.eq.f32.partialorder %v1473, 8.507059e+37
    %v1475 = vand.u32 %v1448, 2147483648
    %v1476 = vor.u32 1.1754944e-38, %v1475
    %v1477 = vsel %vm1474, %v1476, %v1472
    %v1478 = vmul.f32 1.0, %v1477
    %v1479 = vxor.u32 %v1434, 2147483648
    %v1480 = vxor.u32 %v1438, 2147483648
    %v1481 = vmul.f32 %v1479, 1.442695
    %v1482 = vpow.pop %v1481
    %v1483 = vmul.f32 %v1480, 1.442695
    %v1484 = vpow.pop %v1483
    %v1485 = vadd.f32 %v1482, 1.0
    %v1486 = vadd.f32 %v1484, 1.0
    %v1487 = vrcp.pop %v1485
    %v1488 = vmul.f32 %v1485, %v1487
    %v1489 = vsub.f32 1.0, %v1488
    %v1490 = vmul.f32 %v1487, %v1489
    %v1491 = vadd.f32 %v1487, %v1490
    %vm1492 = vweird.f32 %v1485
    %vm1493 = vweird.f32 %v1487
    %vm1494 = vmor %vm1492, %vm1493
    %v1495 = vsel %vm1494, %v1487, %v1491
    %v1496 = vand.u32 2147483647, %v1485
    %vm1497 = vcmp.eq.f32.partialorder %v1496, 8.507059e+37
    %v1498 = vand.u32 %v1485, 2147483648
    %v1499 = vor.u32 1.1754944e-38, %v1498
    %v1500 = vsel %vm1497, %v1499, %v1495
    %v1501 = vmul.f32 1.0, %v1500
    %v1502 = vrcp.pop %v1486
    %v1503 = vmul.f32 %v1486, %v1502
    %v1504 = vsub.f32 1.0, %v1503
    %v1505 = vmul.f32 %v1502, %v1504
    %v1506 = vadd.f32 %v1502, %v1505
    %vm1507 = vweird.f32 %v1486
    %vm1508 = vweird.f32 %v1502
    %vm1509 = vmor %vm1507, %vm1508
    %v1510 = vsel %vm1509, %v1502, %v1506
    %v1511 = vand.u32 2147483647, %v1486
    %vm1512 = vcmp.eq.f32.partialorder %v1511, 8.507059e+37
    %v1513 = vand.u32 %v1486, 2147483648
    %v1514 = vor.u32 1.1754944e-38, %v1513
    %v1515 = vsel %vm1512, %v1514, %v1510
    %v1516 = vmul.f32 1.0, %v1515
    %v1517 = vtanh.pop %v1435
    %v1518 = vtanh.pop %v1439
    %v1519 = vxor.u32 %v1436, 2147483648
    %v1520 = vxor.u32 %v1440, 2147483648
    %v1521 = vmul.f32 %v1519, 1.442695
    %v1522 = vpow.pop %v1521
    %v1523 = vmul.f32 %v1520, 1.442695
    %v1524 = vpow.pop %v1523
    %v1525 = vadd.f32 %v1522, 1.0
    %v1526 = vadd.f32 %v1524, 1.0
    %v1527 = vrcp.pop %v1525
    %v1528 = vmul.f32 %v1525, %v1527
    %v1529 = vsub.f32 1.0, %v1528
    %v1530 = vmul.f32 %v1527, %v1529
    %v1531 = vadd.f32 %v1527, %v1530
    %vm1532 = vweird.f32 %v1525
    %vm1533 = vweird.f32 %v1527
    %vm1534 = vmor %vm1532, %vm1533
    %v1535 = vsel %vm1534, %v1527, %v1531
    %v1536 = vand.u32 2147483647, %v1525
    %vm1537 = vcmp.eq.f32.partialorder %v1536, 8.507059e+37
    %v1538 = vand.u32 %v1525, 2147483648
    %v1539 = vor.u32 1.1754944e-38, %v1538
    %v1540 = vsel %vm1537, %v1539, %v1535
    %v1541 = vmul.f32 1.0, %v1540
    %v1542 = vrcp.pop %v1526
    %v1543 = vmul.f32 %v1526, %v1542
    %v1544 = vsub.f32 1.0, %v1543
    %v1545 = vmul.f32 %v1542, %v1544
    %v1546 = vadd.f32 %v1542, %v1545
    %vm1547 = vweird.f32 %v1526
    %vm1548 = vweird.f32 %v1542
    %vm1549 = vmor %vm1547, %vm1548
    %v1550 = vsel %vm1549, %v1542, %v1546
    %v1551 = vand.u32 2147483647, %v1526
    %vm1552 = vcmp.eq.f32.partialorder %v1551, 8.507059e+37
    %v1553 = vand.u32 %v1526, 2147483648
    %v1554 = vor.u32 1.1754944e-38, %v1553
    %v1555 = vsel %vm1552, %v1554, %v1550
    %v1556 = vmul.f32 1.0, %v1555
    %v1557 = vmul.f32 %v1501, %v1320
    %v1558 = vmul.f32 %v1516, %v1321
    %v1559 = vmul.f32 %v1463, %v1517
    %v1560 = vmul.f32 %v1478, %v1518
    %v1561 = vadd.f32 %v1557, %v1559
    %v1562 = vadd.f32 %v1558, %v1560
    %v1563 = vtanh.pop %v1561
    %v1564 = vtanh.pop %v1562
    %v1565 = vmul.f32 %v1541, %v1563
    %v1566 = vmul.f32 %v1556, %v1564
    %v1567 = vld [vmem:[#allocation7 + $0x5] sm:$0x1]
    %v1568 = vperm.slane %v1567, 0
    %v1569 = vmul.f32 %v1565, %v1568
    %v1570 = vmul.f32 %v1566, %v1568
    %v1571 = vadd.f32 %v1330, %v1569
    %v1572 = vadd.f32 %v1331, %v1570
    %s1573 = scalar_lea.vmem [#allocation3], 384
    %v1574 = vld [vmem:[%s1573] sm:$0xff]
    %v1575 = vld [vmem:[%s1573 + $0x8] sm:$0xff]
    %v1576 = vld [vmem:[%s1573 + $0x10] sm:$0xff]
    %v1577 = vld [vmem:[%s1573 + $0x18] sm:$0xff]
    %v1578 = vld [vmem:[%s1573 + $0x20] sm:$0xff]
    %v1579 = vld [vmem:[%s1573 + $0x28] sm:$0xff]
    %v1580 = vld [vmem:[%s1573 + $0x30] sm:$0xff]
    %v1581 = vld [vmem:[%s1573 + $0x38] sm:$0xff]
    %1582 = vmatpush.msra.mxu0 %v124
    %1583 = vmatpush.msra.mxu0 %v120
    %1584 = vmatpush.msra.mxu0 %v116
    %1585 = vmatpush.msra.mxu0 %v112
    %1586 = vmatpush.msra.mxu0 %v108
    %1587 = vmatpush.msra.mxu0 %v104
    %1588 = vmatpush.msra.mxu0 %v100
    %1589 = vmatpush.msra.mxu0 %v96
    %1590 = vmatpush.msra.mxu0 %v92
    %1591 = vmatpush.msra.mxu0 %v88
    %1592 = vmatpush.msra.mxu0 %v84
    %1593 = vmatpush.msra.mxu0 %v80
    %1594 = vmatpush.msra.mxu0 %v76
    %1595 = vmatpush.msra.mxu0 %v72
    %1596 = vmatpush.msra.mxu0 %v68
    %1597 = vmatpush.msra.mxu0 %v64
    %1598 = vmatmul.f32.gmra.mxu0 %v1565
    %v1599 = vpop.f32.mrf.mxu0
    %v1600 = vadd.f32 0.0, %v1599
    %1601 = vmatmul.f32.gmra.mxu0 %v1566
    %v1602 = vpop.f32.mrf.mxu0
    %v1603 = vadd.f32 0.0, %v1602
    %1604 = vdwg.mxu0
    %1605 = vmatpush.msra.mxu0 %v125
    %1606 = vmatpush.msra.mxu0 %v121
    %1607 = vmatpush.msra.mxu0 %v117
    %1608 = vmatpush.msra.mxu0 %v113
    %1609 = vmatpush.msra.mxu0 %v109
    %1610 = vmatpush.msra.mxu0 %v105
    %1611 = vmatpush.msra.mxu0 %v101
    %1612 = vmatpush.msra.mxu0 %v97
    %1613 = vmatpush.msra.mxu0 %v93
    %1614 = vmatpush.msra.mxu0 %v89
    %1615 = vmatpush.msra.mxu0 %v85
    %1616 = vmatpush.msra.mxu0 %v81
    %1617 = vmatpush.msra.mxu0 %v77
    %1618 = vmatpush.msra.mxu0 %v73
    %1619 = vmatpush.msra.mxu0 %v69
    %1620 = vmatpush.msra.mxu0 %v65
    %1621 = vmatmul.f32.gmra.mxu0 %v1565
    %v1622 = vpop.f32.mrf.mxu0
    %v1623 = vadd.f32 0.0, %v1622
    %1624 = vmatmul.f32.gmra.mxu0 %v1566
    %v1625 = vpop.f32.mrf.mxu0
    %v1626 = vadd.f32 0.0, %v1625
    %1627 = vdwg.mxu0
    %1628 = vmatpush.msra.mxu0 %v126
    %1629 = vmatpush.msra.mxu0 %v122
    %1630 = vmatpush.msra.mxu0 %v118
    %1631 = vmatpush.msra.mxu0 %v114
    %1632 = vmatpush.msra.mxu0 %v110
    %1633 = vmatpush.msra.mxu0 %v106
    %1634 = vmatpush.msra.mxu0 %v102
    %1635 = vmatpush.msra.mxu0 %v98
    %1636 = vmatpush.msra.mxu0 %v94
    %1637 = vmatpush.msra.mxu0 %v90
    %1638 = vmatpush.msra.mxu0 %v86
    %1639 = vmatpush.msra.mxu0 %v82
    %1640 = vmatpush.msra.mxu0 %v78
    %1641 = vmatpush.msra.mxu0 %v74
    %1642 = vmatpush.msra.mxu0 %v70
    %1643 = vmatpush.msra.mxu0 %v66
    %1644 = vmatmul.f32.gmra.mxu0 %v1565
    %v1645 = vpop.f32.mrf.mxu0
    %v1646 = vadd.f32 0.0, %v1645
    %1647 = vmatmul.f32.gmra.mxu0 %v1566
    %v1648 = vpop.f32.mrf.mxu0
    %v1649 = vadd.f32 0.0, %v1648
    %1650 = vdwg.mxu0
    %1651 = vmatpush.msra.mxu0 %v127
    %1652 = vmatpush.msra.mxu0 %v123
    %1653 = vmatpush.msra.mxu0 %v119
    %1654 = vmatpush.msra.mxu0 %v115
    %1655 = vmatpush.msra.mxu0 %v111
    %1656 = vmatpush.msra.mxu0 %v107
    %1657 = vmatpush.msra.mxu0 %v103
    %1658 = vmatpush.msra.mxu0 %v99
    %1659 = vmatpush.msra.mxu0 %v95
    %1660 = vmatpush.msra.mxu0 %v91
    %1661 = vmatpush.msra.mxu0 %v87
    %1662 = vmatpush.msra.mxu0 %v83
    %1663 = vmatpush.msra.mxu0 %v79
    %1664 = vmatpush.msra.mxu0 %v75
    %1665 = vmatpush.msra.mxu0 %v71
    %1666 = vmatpush.msra.mxu0 %v67
    %1667 = vmatmul.f32.gmra.mxu0 %v1565
    %v1668 = vpop.f32.mrf.mxu0
    %v1669 = vadd.f32 0.0, %v1668
    %1670 = vmatmul.f32.gmra.mxu0 %v1566
    %v1671 = vpop.f32.mrf.mxu0
    %v1672 = vadd.f32 0.0, %v1671
    %1673 = vdwg.mxu0
    %v1674 = vadd.f32 %v1574, %v1600
    %v1675 = vadd.f32 %v1575, %v1623
    %v1676 = vadd.f32 %v1576, %v1646
    %v1677 = vadd.f32 %v1577, %v1669
    %v1678 = vadd.f32 %v1578, %v1603
    %v1679 = vadd.f32 %v1579, %v1626
    %v1680 = vadd.f32 %v1580, %v1649
    %v1681 = vadd.f32 %v1581, %v1672
    %v1682 = vxor.u32 %v1674, 2147483648
    %v1683 = vxor.u32 %v1678, 2147483648
    %v1684 = vmul.f32 %v1682, 1.442695
    %v1685 = vpow.pop %v1684
    %v1686 = vmul.f32 %v1683, 1.442695
    %v1687 = vpow.pop %v1686
    %v1688 = vadd.f32 %v1685, 1.0
    %v1689 = vadd.f32 %v1687, 1.0
    %v1690 = vrcp.pop %v1688
    %v1691 = vmul.f32 %v1688, %v1690
    %v1692 = vsub.f32 1.0, %v1691
    %v1693 = vmul.f32 %v1690, %v1692
    %v1694 = vadd.f32 %v1690, %v1693
    %vm1695 = vweird.f32 %v1688
    %vm1696 = vweird.f32 %v1690
    %vm1697 = vmor %vm1695, %vm1696
    %v1698 = vsel %vm1697, %v1690, %v1694
    %v1699 = vand.u32 2147483647, %v1688
    %vm1700 = vcmp.eq.f32.partialorder %v1699, 8.507059e+37
    %v1701 = vand.u32 %v1688, 2147483648
    %v1702 = vor.u32 1.1754944e-38, %v1701
    %v1703 = vsel %vm1700, %v1702, %v1698
    %v1704 = vmul.f32 1.0, %v1703
    %v1705 = vrcp.pop %v1689
    %v1706 = vmul.f32 %v1689, %v1705
    %v1707 = vsub.f32 1.0, %v1706
    %v1708 = vmul.f32 %v1705, %v1707
    %v1709 = vadd.f32 %v1705, %v1708
    %vm1710 = vweird.f32 %v1689
    %vm1711 = vweird.f32 %v1705
    %vm1712 = vmor %vm1710, %vm1711
    %v1713 = vsel %vm1712, %v1705, %v1709
    %v1714 = vand.u32 2147483647, %v1689
    %vm1715 = vcmp.eq.f32.partialorder %v1714, 8.507059e+37
    %v1716 = vand.u32 %v1689, 2147483648
    %v1717 = vor.u32 1.1754944e-38, %v1716
    %v1718 = vsel %vm1715, %v1717, %v1713
    %v1719 = vmul.f32 1.0, %v1718
    %v1720 = vxor.u32 %v1675, 2147483648
    %v1721 = vxor.u32 %v1679, 2147483648
    %v1722 = vmul.f32 %v1720, 1.442695
    %v1723 = vpow.pop %v1722
    %v1724 = vmul.f32 %v1721, 1.442695
    %v1725 = vpow.pop %v1724
    %v1726 = vadd.f32 %v1723, 1.0
    %v1727 = vadd.f32 %v1725, 1.0
    %v1728 = vrcp.pop %v1726
    %v1729 = vmul.f32 %v1726, %v1728
    %v1730 = vsub.f32 1.0, %v1729
    %v1731 = vmul.f32 %v1728, %v1730
    %v1732 = vadd.f32 %v1728, %v1731
    %vm1733 = vweird.f32 %v1726
    %vm1734 = vweird.f32 %v1728
    %vm1735 = vmor %vm1733, %vm1734
    %v1736 = vsel %vm1735, %v1728, %v1732
    %v1737 = vand.u32 2147483647, %v1726
    %vm1738 = vcmp.eq.f32.partialorder %v1737, 8.507059e+37
    %v1739 = vand.u32 %v1726, 2147483648
    %v1740 = vor.u32 1.1754944e-38, %v1739
    %v1741 = vsel %vm1738, %v1740, %v1736
    %v1742 = vmul.f32 1.0, %v1741
    %v1743 = vrcp.pop %v1727
    %v1744 = vmul.f32 %v1727, %v1743
    %v1745 = vsub.f32 1.0, %v1744
    %v1746 = vmul.f32 %v1743, %v1745
    %v1747 = vadd.f32 %v1743, %v1746
    %vm1748 = vweird.f32 %v1727
    %vm1749 = vweird.f32 %v1743
    %vm1750 = vmor %vm1748, %vm1749
    %v1751 = vsel %vm1750, %v1743, %v1747
    %v1752 = vand.u32 2147483647, %v1727
    %vm1753 = vcmp.eq.f32.partialorder %v1752, 8.507059e+37
    %v1754 = vand.u32 %v1727, 2147483648
    %v1755 = vor.u32 1.1754944e-38, %v1754
    %v1756 = vsel %vm1753, %v1755, %v1751
    %v1757 = vmul.f32 1.0, %v1756
    %v1758 = vtanh.pop %v1676
    %v1759 = vtanh.pop %v1680
    %v1760 = vxor.u32 %v1677, 2147483648
    %v1761 = vxor.u32 %v1681, 2147483648
    %v1762 = vmul.f32 %v1760, 1.442695
    %v1763 = vpow.pop %v1762
    %v1764 = vmul.f32 %v1761, 1.442695
    %v1765 = vpow.pop %v1764
    %v1766 = vadd.f32 %v1763, 1.0
    %v1767 = vadd.f32 %v1765, 1.0
    %v1768 = vrcp.pop %v1766
    %v1769 = vmul.f32 %v1766, %v1768
    %v1770 = vsub.f32 1.0, %v1769
    %v1771 = vmul.f32 %v1768, %v1770
    %v1772 = vadd.f32 %v1768, %v1771
    %vm1773 = vweird.f32 %v1766
    %vm1774 = vweird.f32 %v1768
    %vm1775 = vmor %vm1773, %vm1774
    %v1776 = vsel %vm1775, %v1768, %v1772
    %v1777 = vand.u32 2147483647, %v1766
    %vm1778 = vcmp.eq.f32.partialorder %v1777, 8.507059e+37
    %v1779 = vand.u32 %v1766, 2147483648
    %v1780 = vor.u32 1.1754944e-38, %v1779
    %v1781 = vsel %vm1778, %v1780, %v1776
    %v1782 = vmul.f32 1.0, %v1781
    %v1783 = vrcp.pop %v1767
    %v1784 = vmul.f32 %v1767, %v1783
    %v1785 = vsub.f32 1.0, %v1784
    %v1786 = vmul.f32 %v1783, %v1785
    %v1787 = vadd.f32 %v1783, %v1786
    %vm1788 = vweird.f32 %v1767
    %vm1789 = vweird.f32 %v1783
    %vm1790 = vmor %vm1788, %vm1789
    %v1791 = vsel %vm1790, %v1783, %v1787
    %v1792 = vand.u32 2147483647, %v1767
    %vm1793 = vcmp.eq.f32.partialorder %v1792, 8.507059e+37
    %v1794 = vand.u32 %v1767, 2147483648
    %v1795 = vor.u32 1.1754944e-38, %v1794
    %v1796 = vsel %vm1793, %v1795, %v1791
    %v1797 = vmul.f32 1.0, %v1796
    %v1798 = vmul.f32 %v1742, %v1561
    %v1799 = vmul.f32 %v1757, %v1562
    %v1800 = vmul.f32 %v1704, %v1758
    %v1801 = vmul.f32 %v1719, %v1759
    %v1802 = vadd.f32 %v1798, %v1800
    %v1803 = vadd.f32 %v1799, %v1801
    %v1804 = vtanh.pop %v1802
    %v1805 = vtanh.pop %v1803
    %v1806 = vmul.f32 %v1782, %v1804
    %v1807 = vmul.f32 %v1797, %v1805
    %v1808 = vld [vmem:[#allocation7 + $0x6] sm:$0x1]
    %v1809 = vperm.slane %v1808, 0
    %v1810 = vmul.f32 %v1806, %v1809
    %v1811 = vmul.f32 %v1807, %v1809
    %v1812 = vadd.f32 %v1571, %v1810
    %v1813 = vadd.f32 %v1572, %v1811
    %s1814 = scalar_lea.vmem [#allocation3], 448
    %v1815 = vld [vmem:[%s1814] sm:$0xff]
    %v1816 = vld [vmem:[%s1814 + $0x8] sm:$0xff]
    %v1817 = vld [vmem:[%s1814 + $0x10] sm:$0xff]
    %v1818 = vld [vmem:[%s1814 + $0x18] sm:$0xff]
    %v1819 = vld [vmem:[%s1814 + $0x20] sm:$0xff]
    %v1820 = vld [vmem:[%s1814 + $0x28] sm:$0xff]
    %v1821 = vld [vmem:[%s1814 + $0x30] sm:$0xff]
    %v1822 = vld [vmem:[%s1814 + $0x38] sm:$0xff]
    %1823 = vmatpush.msra.mxu0 %v124
    %1824 = vmatpush.msra.mxu0 %v120
    %1825 = vmatpush.msra.mxu0 %v116
    %1826 = vmatpush.msra.mxu0 %v112
    %1827 = vmatpush.msra.mxu0 %v108
    %1828 = vmatpush.msra.mxu0 %v104
    %1829 = vmatpush.msra.mxu0 %v100
    %1830 = vmatpush.msra.mxu0 %v96
    %1831 = vmatpush.msra.mxu0 %v92
    %1832 = vmatpush.msra.mxu0 %v88
    %1833 = vmatpush.msra.mxu0 %v84
    %1834 = vmatpush.msra.mxu0 %v80
    %1835 = vmatpush.msra.mxu0 %v76
    %1836 = vmatpush.msra.mxu0 %v72
    %1837 = vmatpush.msra.mxu0 %v68
    %1838 = vmatpush.msra.mxu0 %v64
    %1839 = vmatmul.f32.gmra.mxu0 %v1806
    %v1840 = vpop.f32.mrf.mxu0
    %v1841 = vadd.f32 0.0, %v1840
    %1842 = vmatmul.f32.gmra.mxu0 %v1807
    %v1843 = vpop.f32.mrf.mxu0
    %v1844 = vadd.f32 0.0, %v1843
    %1845 = vdwg.mxu0
    %1846 = vmatpush.msra.mxu0 %v125
    %1847 = vmatpush.msra.mxu0 %v121
    %1848 = vmatpush.msra.mxu0 %v117
    %1849 = vmatpush.msra.mxu0 %v113
    %1850 = vmatpush.msra.mxu0 %v109
    %1851 = vmatpush.msra.mxu0 %v105
    %1852 = vmatpush.msra.mxu0 %v101
    %1853 = vmatpush.msra.mxu0 %v97
    %1854 = vmatpush.msra.mxu0 %v93
    %1855 = vmatpush.msra.mxu0 %v89
    %1856 = vmatpush.msra.mxu0 %v85
    %1857 = vmatpush.msra.mxu0 %v81
    %1858 = vmatpush.msra.mxu0 %v77
    %1859 = vmatpush.msra.mxu0 %v73
    %1860 = vmatpush.msra.mxu0 %v69
    %1861 = vmatpush.msra.mxu0 %v65
    %1862 = vmatmul.f32.gmra.mxu0 %v1806
    %v1863 = vpop.f32.mrf.mxu0
    %v1864 = vadd.f32 0.0, %v1863
    %1865 = vmatmul.f32.gmra.mxu0 %v1807
    %v1866 = vpop.f32.mrf.mxu0
    %v1867 = vadd.f32 0.0, %v1866
    %1868 = vdwg.mxu0
    %1869 = vmatpush.msra.mxu0 %v126
    %1870 = vmatpush.msra.mxu0 %v122
    %1871 = vmatpush.msra.mxu0 %v118
    %1872 = vmatpush.msra.mxu0 %v114
    %1873 = vmatpush.msra.mxu0 %v110
    %1874 = vmatpush.msra.mxu0 %v106
    %1875 = vmatpush.msra.mxu0 %v102
    %1876 = vmatpush.msra.mxu0 %v98
    %1877 = vmatpush.msra.mxu0 %v94
    %1878 = vmatpush.msra.mxu0 %v90
    %1879 = vmatpush.msra.mxu0 %v86
    %1880 = vmatpush.msra.mxu0 %v82
    %1881 = vmatpush.msra.mxu0 %v78
    %1882 = vmatpush.msra.mxu0 %v74
    %1883 = vmatpush.msra.mxu0 %v70
    %1884 = vmatpush.msra.mxu0 %v66
    %1885 = vmatmul.f32.gmra.mxu0 %v1806
    %v1886 = vpop.f32.mrf.mxu0
    %v1887 = vadd.f32 0.0, %v1886
    %1888 = vmatmul.f32.gmra.mxu0 %v1807
    %v1889 = vpop.f32.mrf.mxu0
    %v1890 = vadd.f32 0.0, %v1889
    %1891 = vdwg.mxu0
    %1892 = vmatpush.msra.mxu0 %v127
    %1893 = vmatpush.msra.mxu0 %v123
    %1894 = vmatpush.msra.mxu0 %v119
    %1895 = vmatpush.msra.mxu0 %v115
    %1896 = vmatpush.msra.mxu0 %v111
    %1897 = vmatpush.msra.mxu0 %v107
    %1898 = vmatpush.msra.mxu0 %v103
    %1899 = vmatpush.msra.mxu0 %v99
    %1900 = vmatpush.msra.mxu0 %v95
    %1901 = vmatpush.msra.mxu0 %v91
    %1902 = vmatpush.msra.mxu0 %v87
    %1903 = vmatpush.msra.mxu0 %v83
    %1904 = vmatpush.msra.mxu0 %v79
    %1905 = vmatpush.msra.mxu0 %v75
    %1906 = vmatpush.msra.mxu0 %v71
    %1907 = vmatpush.msra.mxu0 %v67
    %1908 = vmatmul.f32.gmra.mxu0 %v1806
    %v1909 = vpop.f32.mrf.mxu0
    %v1910 = vadd.f32 0.0, %v1909
    %1911 = vmatmul.f32.gmra.mxu0 %v1807
    %v1912 = vpop.f32.mrf.mxu0
    %v1913 = vadd.f32 0.0, %v1912
    %1914 = vdwg.mxu0
    %v1915 = vadd.f32 %v1815, %v1841
    %v1916 = vadd.f32 %v1816, %v1864
    %v1917 = vadd.f32 %v1817, %v1887
    %v1918 = vadd.f32 %v1818, %v1910
    %v1919 = vadd.f32 %v1819, %v1844
    %v1920 = vadd.f32 %v1820, %v1867
    %v1921 = vadd.f32 %v1821, %v1890
    %v1922 = vadd.f32 %v1822, %v1913
    %v1923 = vxor.u32 %v1915, 2147483648
    %v1924 = vxor.u32 %v1919, 2147483648
    %v1925 = vmul.f32 %v1923, 1.442695
    %v1926 = vpow.pop %v1925
    %v1927 = vmul.f32 %v1924, 1.442695
    %v1928 = vpow.pop %v1927
    %v1929 = vadd.f32 %v1926, 1.0
    %v1930 = vadd.f32 %v1928, 1.0
    %v1931 = vrcp.pop %v1929
    %v1932 = vmul.f32 %v1929, %v1931
    %v1933 = vsub.f32 1.0, %v1932
    %v1934 = vmul.f32 %v1931, %v1933
    %v1935 = vadd.f32 %v1931, %v1934
    %vm1936 = vweird.f32 %v1929
    %vm1937 = vweird.f32 %v1931
    %vm1938 = vmor %vm1936, %vm1937
    %v1939 = vsel %vm1938, %v1931, %v1935
    %v1940 = vand.u32 2147483647, %v1929
    %vm1941 = vcmp.eq.f32.partialorder %v1940, 8.507059e+37
    %v1942 = vand.u32 %v1929, 2147483648
    %v1943 = vor.u32 1.1754944e-38, %v1942
    %v1944 = vsel %vm1941, %v1943, %v1939
    %v1945 = vmul.f32 1.0, %v1944
    %v1946 = vrcp.pop %v1930
    %v1947 = vmul.f32 %v1930, %v1946
    %v1948 = vsub.f32 1.0, %v1947
    %v1949 = vmul.f32 %v1946, %v1948
    %v1950 = vadd.f32 %v1946, %v1949
    %vm1951 = vweird.f32 %v1930
    %vm1952 = vweird.f32 %v1946
    %vm1953 = vmor %vm1951, %vm1952
    %v1954 = vsel %vm1953, %v1946, %v1950
    %v1955 = vand.u32 2147483647, %v1930
    %vm1956 = vcmp.eq.f32.partialorder %v1955, 8.507059e+37
    %v1957 = vand.u32 %v1930, 2147483648
    %v1958 = vor.u32 1.1754944e-38, %v1957
    %v1959 = vsel %vm1956, %v1958, %v1954
    %v1960 = vmul.f32 1.0, %v1959
    %v1961 = vxor.u32 %v1916, 2147483648
    %v1962 = vxor.u32 %v1920, 2147483648
    %v1963 = vmul.f32 %v1961, 1.442695
    %v1964 = vpow.pop %v1963
    %v1965 = vmul.f32 %v1962, 1.442695
    %v1966 = vpow.pop %v1965
    %v1967 = vadd.f32 %v1964, 1.0
    %v1968 = vadd.f32 %v1966, 1.0
    %v1969 = vrcp.pop %v1967
    %v1970 = vmul.f32 %v1967, %v1969
    %v1971 = vsub.f32 1.0, %v1970
    %v1972 = vmul.f32 %v1969, %v1971
    %v1973 = vadd.f32 %v1969, %v1972
    %vm1974 = vweird.f32 %v1967
    %vm1975 = vweird.f32 %v1969
    %vm1976 = vmor %vm1974, %vm1975
    %v1977 = vsel %vm1976, %v1969, %v1973
    %v1978 = vand.u32 2147483647, %v1967
    %vm1979 = vcmp.eq.f32.partialorder %v1978, 8.507059e+37
    %v1980 = vand.u32 %v1967, 2147483648
    %v1981 = vor.u32 1.1754944e-38, %v1980
    %v1982 = vsel %vm1979, %v1981, %v1977
    %v1983 = vmul.f32 1.0, %v1982
    %v1984 = vrcp.pop %v1968
    %v1985 = vmul.f32 %v1968, %v1984
    %v1986 = vsub.f32 1.0, %v1985
    %v1987 = vmul.f32 %v1984, %v1986
    %v1988 = vadd.f32 %v1984, %v1987
    %vm1989 = vweird.f32 %v1968
    %vm1990 = vweird.f32 %v1984
    %vm1991 = vmor %vm1989, %vm1990
    %v1992 = vsel %vm1991, %v1984, %v1988
    %v1993 = vand.u32 2147483647, %v1968
    %vm1994 = vcmp.eq.f32.partialorder %v1993, 8.507059e+37
    %v1995 = vand.u32 %v1968, 2147483648
    %v1996 = vor.u32 1.1754944e-38, %v1995
    %v1997 = vsel %vm1994, %v1996, %v1992
    %v1998 = vmul.f32 1.0, %v1997
    %v1999 = vtanh.pop %v1917
    %v2000 = vtanh.pop %v1921
    %v2001 = vxor.u32 %v1918, 2147483648
    %v2002 = vxor.u32 %v1922, 2147483648
    %v2003 = vmul.f32 %v2001, 1.442695
    %v2004 = vpow.pop %v2003
    %v2005 = vmul.f32 %v2002, 1.442695
    %v2006 = vpow.pop %v2005
    %v2007 = vadd.f32 %v2004, 1.0
    %v2008 = vadd.f32 %v2006, 1.0
    %v2009 = vrcp.pop %v2007
    %v2010 = vmul.f32 %v2007, %v2009
    %v2011 = vsub.f32 1.0, %v2010
    %v2012 = vmul.f32 %v2009, %v2011
    %v2013 = vadd.f32 %v2009, %v2012
    %vm2014 = vweird.f32 %v2007
    %vm2015 = vweird.f32 %v2009
    %vm2016 = vmor %vm2014, %vm2015
    %v2017 = vsel %vm2016, %v2009, %v2013
    %v2018 = vand.u32 2147483647, %v2007
    %vm2019 = vcmp.eq.f32.partialorder %v2018, 8.507059e+37
    %v2020 = vand.u32 %v2007, 2147483648
    %v2021 = vor.u32 1.1754944e-38, %v2020
    %v2022 = vsel %vm2019, %v2021, %v2017
    %v2023 = vmul.f32 1.0, %v2022
    %v2024 = vrcp.pop %v2008
    %v2025 = vmul.f32 %v2008, %v2024
    %v2026 = vsub.f32 1.0, %v2025
    %v2027 = vmul.f32 %v2024, %v2026
    %v2028 = vadd.f32 %v2024, %v2027
    %vm2029 = vweird.f32 %v2008
    %vm2030 = vweird.f32 %v2024
    %vm2031 = vmor %vm2029, %vm2030
    %v2032 = vsel %vm2031, %v2024, %v2028
    %v2033 = vand.u32 2147483647, %v2008
    %vm2034 = vcmp.eq.f32.partialorder %v2033, 8.507059e+37
    %v2035 = vand.u32 %v2008, 2147483648
    %v2036 = vor.u32 1.1754944e-38, %v2035
    %v2037 = vsel %vm2034, %v2036, %v2032
    %v2038 = vmul.f32 1.0, %v2037
    %v2039 = vmul.f32 %v1983, %v1802
    %v2040 = vmul.f32 %v1998, %v1803
    %v2041 = vmul.f32 %v1945, %v1999
    %v2042 = vmul.f32 %v1960, %v2000
    %v2043 = vadd.f32 %v2039, %v2041
    %v2044 = vadd.f32 %v2040, %v2042
    %v2045 = vtanh.pop %v2043
    %v2046 = vtanh.pop %v2044
    %v2047 = vmul.f32 %v2023, %v2045
    %v2048 = vmul.f32 %v2038, %v2046
    %v2049 = vld [vmem:[#allocation7 + $0x7] sm:$0x1]
    %v2050 = vperm.slane %v2049, 0
    %v2051 = vmul.f32 %v2047, %v2050
    %v2052 = vmul.f32 %v2048, %v2050
    %v2053 = vadd.f32 %v1812, %v2051
    %v2054 = vadd.f32 %v1813, %v2052
    %2055 = vadd.xlane.f32.xlu0 %v2053
    %v2056 = vpop.xlane.xlu0 %2055
    %2057 = vadd.xlane.f32.xlu0 %v2054
    %v2058 = vpop.xlane.xlu0 %2057
    %v2059 = vld [vmem:[#allocation2] sm:$0x1]
    %v2061 = vperm.slane %v2059, 0
    %v2063 = vadd.f32 %v2056, %v2061
    %v2064 = vadd.f32 %v2058, %v2061
    %vm2065 = vcmask 7168
    %2066 = vst.msk [vmem:[%s4] sm:$0xff] %vm2065, %v2063
    %2067 = vst.msk [vmem:[%s4 + $0x8] sm:$0xff] %vm2065, %v2064
    // Predicated region
    $region30: #{tpu_custom_call.1} parent=1 // pred_check
      _
    $region31: #{tpu_custom_call.1} parent=1 // pred_check_branch
      %2069 = sbr.rel (0) target = $region33
    $region32: #{tpu_custom_call.1} parent=1 // pred_region
      _
    $region33: #{tpu_custom_call.1} parent=1 // pred_fallthru
      _
    // Predicated region
    $region34: #{tpu_custom_call.1} parent=1 // pred_check
      _
    $region35: #{tpu_custom_call.1} parent=1 // pred_check_branch
      %2071 = sbr.rel (0) target = $region37
    $region36: #{tpu_custom_call.1} parent=1 // pred_region
      _
    $region37: #{tpu_custom_call.1} parent=1 // pred_fallthru
      _
    %2072 = vsyncpa [#allocation4], 1
    %2073 = vsyncpa [#allocation6], 1

</llo_original>
